<compile_context>
chip_gen: v7x
topology: tpu7x:2x2x1
jax: 0.10.0
libtpu: 0.0.40
codegen_flags: <defaults>
</compile_context>

<pallas_src>
import jax
import jax.numpy as jnp
from jax.experimental import pallas as pl
from jax.experimental.pallas import tpu as pltpu

_LANE = 128
_SUBLANE = 8
_HIDDEN_DIM = 32          # SA(hidden_dim=32, n_heads=17) is hard-coded inside Joint_Att
_N_HEADS = 17
_BN_EPS = 1e-5
_LN_EPS = 1e-5
# ~2 MiB per input tile -> <= ~8-16 MiB resident with double buffering: big enough to
# amortize the ~0.35us per-grid-step overhead, small enough for v7x's 64 MiB VMEM.
_TARGET_BLOCK_BYTES = 2 << 20


def _padded_lanes(n):
    return ((n + _LANE - 1) // _LANE) * _LANE


def _pick_block(dim, per_unit_bytes, target_bytes=_TARGET_BLOCK_BYTES):
    """Largest block along `dim` that is either the full dim or a multiple of 8 that
    divides `dim`, sized to roughly `target_bytes` per tile (never collapses to a
    tiny tile and never violates the (8, 128) sublane constraint)."""
    if dim * per_unit_bytes <= target_bytes:
        return dim
    cap = max(_SUBLANE, (target_bytes // max(per_unit_bytes, 1)) // _SUBLANE * _SUBLANE)
    blk = min(cap, (dim // _SUBLANE) * _SUBLANE)
    while blk >= _SUBLANE and dim % blk:
        blk -= _SUBLANE
    return blk if blk >= _SUBLANE else dim


# --------------------------------------------------------------------------------------
# Kernel 1: fused avg + max pooling over (C, T) per (n, v)
# --------------------------------------------------------------------------------------
def _pooled_stats(x):
    """AdaptiveAvgPool2d(1) and AdaptiveMaxPool2d(1) of x.transpose(1, 3):
    per-(n, v) mean and max over (C, T).  Returns two (N, V) float32 arrays."""
    N, C, T, V = x.shape
    tb = _pick_block(T, C * _padded_lanes(V) * x.dtype.itemsize)
    n_tb = T // tb
    inv_ct = 1.0 / float(C * T)

    def kernel(x_ref, avg_ref, max_ref, sum_acc, max_acc):
        ti = pl.program_id(1)

        @pl.when(ti == 0)
        def _init():
            sum_acc[...] = jnp.zeros_like(sum_acc)
            max_acc[...] = jnp.full_like(max_acc, -jnp.inf)

        blk = x_ref[...].astype(jnp.float32).reshape(C * tb, V)   # collapse leading dims
        sum_acc[...] += jnp.sum(blk, axis=0, keepdims=True)
        max_acc[...] = jnp.maximum(max_acc[...], jnp.max(blk, axis=0, keepdims=True))

        @pl.when(ti == n_tb - 1)
        def _finalize():
            avg_ref[...] = (sum_acc[...] * inv_ct).reshape(1, 1, V)
            max_ref[...] = max_acc[...].reshape(1, 1, V)

    avg, mx = pl.pallas_call(
        kernel,
        out_shape=(jax.ShapeDtypeStruct((N, 1, V), jnp.float32),
                   jax.ShapeDtypeStruct((N, 1, V), jnp.float32)),
        grid_spec=pltpu.PrefetchScalarGridSpec(
            num_scalar_prefetch=0,
            grid=(N, n_tb),
            in_specs=[pl.BlockSpec((1, C, tb, V), lambda n, t: (n, 0, t, 0))],
            out_specs=(pl.BlockSpec((1, 1, V), lambda n, t: (n, 0, 0)),
                       pl.BlockSpec((1, 1, V), lambda n, t: (n, 0, 0))),
            scratch_shapes=[pltpu.VMEM((1, V), jnp.float32),
                            pltpu.VMEM((1, V), jnp.float32)]),
        compiler_params=pltpu.CompilerParams(
            dimension_semantics=("parallel", "arbitrary")),
    )(x)
    return avg.reshape(N, V), mx.reshape(N, V)


# --------------------------------------------------------------------------------------
# Kernel 2: fcn1 -> SA -> fcn gate chain (tiny (N, V) tensors, fully VMEM resident)
# --------------------------------------------------------------------------------------
def _joint_gate(avg, mx, p):
    N, V = avg.shape
    inner = _HIDDEN_DIM * _N_HEADS
    scale = float(_HIDDEN_DIM) ** -0.5
    f32 = jnp.float32

    # ---- fold BatchNorms (inference mode) into affine scale/shift (tiny wrapper ops) ----
    s0 = p["bn1_g"] / jnp.sqrt(p["bn1_v"] + _BN_EPS)
    t0 = p["bn1_b"] - p["bn1_m"] * s0
    # [w_avg, w_max, bias] of fcn1 with BN1 folded in -> three SMEM scalars.
    fcn1 = jnp.concatenate([p["fcn1_w"].reshape(2) * s0,
                            p["fcn1_b"] * s0 + t0]).astype(f32)            # (3,)

    ln_g = p["ln_g"].reshape(1, V).astype(f32)
    ln_b = p["ln_b"].reshape(1, V).astype(f32)
    wq = p["qk_w"][:inner].T.astype(f32)                                   # (V, inner)
    wk = p["qk_w"][inner:].T.astype(f32)                                   # (V, inner)
    bq = p["qk_b"][:inner].reshape(1, inner).astype(f32)
    bk = p["qk_b"][inner:].reshape(1, inner).astype(f32)
    # dots[:, h] = sum_d (q*k)[:, h*Dh + d]  expressed as a matmul (no in-kernel reshapes)
    gsum = (jnp.arange(inner)[:, None] // _HIDDEN_DIM
            == jnp.arange(_N_HEADS)[None, :]).astype(f32)                  # (inner, heads)

    s1 = p["bn2_g"] / jnp.sqrt(p["bn2_v"] + _BN_EPS)
    t1 = p["bn2_b"] - p["bn2_m"] * s1
    w1 = (p["w1"].T * s1[None, :]).astype(f32)                             # (V, V//2) BN2-folded
    c1 = (p["b1"] * s1 + t1).reshape(1, -1).astype(f32)                    # (1, V//2)
    w2 = p["w2"].T.astype(f32)                                             # (V//2, V)
    b2 = p["b2"].reshape(1, V).astype(f32)

    def kernel(fcn1_ref, avg_ref, max_ref, lng_ref, lnb_ref, wq_ref, bq_ref,
               wk_ref, bk_ref, gsum_ref, w1_ref, c1_ref, w2_ref, b2_ref, gate_ref):
        # fcn1: 1x1 conv over the [avg, max] channels + folded BN1 + ReLU -> (N, V)
        s = jnp.maximum(avg_ref[...] * fcn1_ref[0] + max_ref[...] * fcn1_ref[1]
                        + fcn1_ref[2], 0.0)
        # SA.ln: LayerNorm over the joint axis
        mu = jnp.mean(s, axis=-1, keepdims=True)
        var = jnp.mean(jnp.square(s - mu), axis=-1, keepdims=True)
        z = (s - mu) * jax.lax.rsqrt(var + _LN_EPS) * lng_ref[...] + lnb_ref[...]
        # SA.to_qk (pre-split into q / k halves) and per-head dot(q, k) * scale
        q = jnp.dot(z, wq_ref[...], preferred_element_type=jnp.float32) + bq_ref[...]
        k = jnp.dot(z, wk_ref[...], preferred_element_type=jnp.float32) + bk_ref[...]
        dots = jnp.dot(q * k, gsum_ref[...], preferred_element_type=jnp.float32) * scale
        # softmax over the key axis, which has length 1 -> exactly 1.0
        # (NaN/Inf still propagate, matching torch.softmax on a singleton dim).
        attn = jnp.exp(dots - dots)                                        # (N, heads) == (N, V)
        # fcn: conv1x1(V->V//2) + folded BN2 + ReLU, conv1x1(V//2->V), softmax over joints
        h = jnp.maximum(jnp.dot(attn, w1_ref[...], preferred_element_type=jnp.float32)
                        + c1_ref[...], 0.0)
        logits = jnp.dot(h, w2_ref[...], preferred_element_type=jnp.float32) + b2_ref[...]
        e = jnp.exp(logits - jnp.max(logits, axis=-1, keepdims=True))
        gate_ref[...] = e / jnp.sum(e, axis=-1, keepdims=True)

    vmem = pl.BlockSpec(memory_space=pltpu.MemorySpace.VMEM)
    smem = pl.BlockSpec(memory_space=pltpu.MemorySpace.SMEM)
    return pl.pallas_call(
        kernel,
        out_shape=jax.ShapeDtypeStruct((N, V), f32),
        in_specs=[smem] + [vmem] * 13,
        out_specs=vmem,
    )(fcn1, avg, mx, ln_g, ln_b, wq, bq, wk, bk, gsum, w1, c1, w2, b2)


# --------------------------------------------------------------------------------------
# Kernel 3: out = ReLU(BN3(x * gate) + x), lane-dense (N, C, T*V) view
# --------------------------------------------------------------------------------------
def _apply_gate_bn_relu(x, gate, p):
    N, C, T, V = x.shape
    TV = T * V
    f32 = jnp.float32

    sc = (p["bn3_g"] / jnp.sqrt(p["bn3_v"] + _BN_EPS)).astype(f32)
    sh = (p["bn3_b"] - p["bn3_m"] * sc).astype(f32)
    sc3 = sc.reshape(1, C, 1)
    sh3 = sh.reshape(1, C, 1)

    # Lane-dense view: folding (T, V) into the lane axis gives wide unmasked stores
    # (V alone would be only 17 lanes).  The reshape is contiguous -> free, no pad/slice.
    x3 = x.reshape(N, C, TV)
    # Gate tiled along T in the wrapper: a C-times-smaller side input, reused per channel block.
    gate_tv = jnp.tile(gate.reshape(N, 1, V).astype(f32), (1, 1, T))       # (N, 1, TV)

    cb = _pick_block(C, _padded_lanes(TV) * x.dtype.itemsize)
    n_cb = C // cb

    def kernel(x_ref, g_ref, sc_ref, sh_ref, o_ref):
        xb = x_ref[...].astype(jnp.float32)                                # (1, cb, TV)
        y = xb * g_ref[...] * sc_ref[...] + sh_ref[...] + xb               # BN3(x*gate) + res
        o_ref[...] = jnp.maximum(y, 0.0).astype(o_ref.dtype)

    out3 = pl.pallas_call(
        kernel,
        out_shape=jax.ShapeDtypeStruct((N, C, TV), x.dtype),
        grid_spec=pltpu.PrefetchScalarGridSpec(
            num_scalar_prefetch=0,
            grid=(N, n_cb),
            in_specs=[pl.BlockSpec((1, cb, TV), lambda n, c: (n, c, 0)),
                      pl.BlockSpec((1, 1, TV), lambda n, c: (n, 0, 0)),
                      pl.BlockSpec((1, cb, 1), lambda n, c: (0, c, 0)),
                      pl.BlockSpec((1, cb, 1), lambda n, c: (0, c, 0))],
            out_specs=pl.BlockSpec((1, cb, TV), lambda n, c: (n, c, 0))),
        compiler_params=pltpu.CompilerParams(
            dimension_semantics=("parallel", "parallel")),
    )(x3, gate_tv, sc3, sh3)
    return out3.reshape(N, C, T, V)


def joint_att_forward(x, params):
    """Pallas forward pass of Joint_Att (BatchNorm in inference mode)."""
    N, C, T, V = x.shape
    assert V == _N_HEADS, "Joint_Att is only shape-consistent for num_joint == 17"
    avg, mx = _pooled_stats(x)                    # kernel 1: one HBM read of x
    gate = _joint_gate(avg, mx, params)           # kernel 2: tiny gate chain in VMEM
    return _apply_gate_bn_relu(x, gate, params)   # kernel 3: one HBM read + write of x


# --------------------------------------------------------------------------------------
# Parameters + pure-JAX reference (mirrors the torch code op-for-op)
# --------------------------------------------------------------------------------------
def init_joint_att_params(key, num_joint, channel):
    assert num_joint == _N_HEADS
    inner = _HIDDEN_DIM * _N_HEADS
    ks = list(jax.random.split(key, 24))
    nrm = lambda k, shape, s=1.0: (s * jax.random.normal(k, shape)).astype(jnp.float32)
    pos = lambda k, shape: jax.random.uniform(k, shape, jnp.float32, 0.5, 1.5)
    V = num_joint
    return {
        # fcn1 = Conv2d(2, 1, 1) + BatchNorm2d(1) (+ ReLU)
        "fcn1_w": nrm(ks[0], (1, 2), 0.5), "fcn1_b": nrm(ks[1], (1,), 0.1),
        "bn1_g": pos(ks[2], (1,)), "bn1_b": nrm(ks[3], (1,), 0.1),
        "bn1_m": nrm(ks[4], (1,), 0.1), "bn1_v": pos(ks[5], (1,)),
        # SA: LayerNorm(V) + Linear(V, 2*inner) (weight ~ N(0, 1) per the torch init)
        "ln_g": pos(ks[6], (V,)), "ln_b": nrm(ks[7], (V,), 0.1),
        "qk_w": nrm(ks[8], (2 * inner, V), 1.0), "qk_b": nrm(ks[9], (2 * inner,), 0.1),
        # fcn = Conv2d(V, V//2, 1) + BN + ReLU + Conv2d(V//2, V, 1) + Softmax(dim=1)
        "w1": nrm(ks[10], (V // 2, V), 0.3), "b1": nrm(ks[11], (V // 2,), 0.1),
        "bn2_g": pos(ks[12], (V // 2,)), "bn2_b": nrm(ks[13], (V // 2,), 0.1),
        "bn2_m": nrm(ks[14], (V // 2,), 0.1), "bn2_v": pos(ks[15], (V // 2,)),
        "w2": nrm(ks[16], (V, V // 2), 0.3), "b2": nrm(ks[17], (V,), 0.1),
        # trailing BatchNorm2d(channel)
        "bn3_g": pos(ks[18], (channel,)), "bn3_b": nrm(ks[19], (channel,), 0.1),
        "bn3_m": nrm(ks[20], (channel,), 0.1), "bn3_v": pos(ks[21], (channel,)),
    }


def joint_att_reference(x, p):
    N, C, T, V = x.shape
    inner = _HIDDEN_DIM * _N_HEADS
    scale = float(_HIDDEN_DIM) ** -0.5
    hi = "highest"

    def bn(u, g, b, m, v, axis):
        shape = [1] * u.ndim
        shape[axis] = -1
        return ((u - m.reshape(shape)) / jnp.sqrt(v.reshape(shape) + _BN_EPS)
                * g.reshape(shape) + b.reshape(shape))

    xt = jnp.transpose(x, (0, 3, 2, 1))                               # (N, V, T, C)
    avg = jnp.mean(xt, axis=(2, 3), keepdims=True)
    mx = jnp.max(xt, axis=(2, 3), keepdims=True)
    xa = jnp.transpose(jnp.concatenate([avg, mx], axis=2), (0, 2, 1, 3))   # (N, 2, V, 1)

    z = jnp.einsum("oc,ncvk->novk", p["fcn1_w"].reshape(1, 2), xa, precision=hi)
    z = z + p["fcn1_b"].reshape(1, 1, 1, 1)
    z = jax.nn.relu(bn(z, p["bn1_g"], p["bn1_b"], p["bn1_m"], p["bn1_v"], 1))
    s = jnp.transpose(z, (0, 2, 1, 3))                                # (N, V, 1, 1)

    # SA
    y = jnp.transpose(s, (0, 2, 3, 1))                                # (N, 1, 1, V)
    mu = jnp.mean(y, axis=-1, keepdims=True)
    var = jnp.mean(jnp.square(y - mu), axis=-1, keepdims=True)
    yn = (y - mu) / jnp.sqrt(var + _LN_EPS) * p["ln_g"] + p["ln_b"]
    qk = jnp.einsum("ntvc,oc->ntvo", yn, p["qk_w"], precision=hi) + p["qk_b"]
    q = qk[..., :inner].reshape(N, _N_HEADS, _HIDDEN_DIM)
    k = qk[..., inner:].reshape(N, _N_HEADS, _HIDDEN_DIM)
    dots = jnp.sum(q * k, axis=-1) * scale                            # (N, heads)
    attn = jax.nn.softmax(dots[..., None], axis=-1)[..., 0]           # singleton key axis -> 1
    attn = attn[:, :, None, None]                                     # (N, heads, 1, 1)

    # fcn
    h = jnp.einsum("oc,nchw->nohw", p["w1"], attn, precision=hi) + p["b1"].reshape(1, -1, 1, 1)
    h = jax.nn.relu(bn(h, p["bn2_g"], p["bn2_b"], p["bn2_m"], p["bn2_v"], 1))
    g = jnp.einsum("oc,nchw->nohw", p["w2"], h, precision=hi) + p["b2"].reshape(1, -1, 1, 1)
    gate = jax.nn.softmax(g, axis=1)[:, :, 0, 0]                      # .squeeze() -> (N, V)

    xg = x * gate[:, None, None, :]
    return jax.nn.relu(bn(xg, p["bn3_g"], p["bn3_b"], p["bn3_m"], p["bn3_v"], 1) + x)


if __name__ == "__main__":
    key = jax.random.PRNGKey(0)
    # Small shapes consistent with the module: SA hard-codes n_heads=17, which must
    # equal num_joint (V) for Joint_Att to be shape-consistent.  batch=2, channel=4, T=16.
    N, C, T, V = 2, 4, 16, 17
    k_x, k_p = jax.random.split(key)
    x = jax.random.normal(k_x, (N, C, T, V), dtype=jnp.float32)
    params = init_joint_att_params(k_p, num_joint=V, channel=C)

    out = jax.jit(joint_att_forward)(x, params)
    out = jax.block_until_ready(out)

    ref = joint_att_reference(x, params)
    assert out.shape == x.shape and out.dtype == x.dtype
    assert bool(jnp.allclose(out, ref, rtol=2e-3, atol=2e-3)), (
        "mismatch vs pure-JAX reference: max abs diff = "
        f"{float(jnp.max(jnp.abs(out - ref)))}")
    print("KERNEL_OK")
</pallas_src>

<mosaic_0001>
module attributes {stable_mosaic.version = 11 : i64} {
  func.func @kernel(%arg0: i32, %arg1: i32, %arg2: memref<1x4x16x17xf32, #tpu.memory_space<vmem>>, %arg3: memref<1x1x17xf32, #tpu.memory_space<vmem>>, %arg4: memref<1x1x17xf32, #tpu.memory_space<vmem>>, %arg5: memref<1x17xf32, #tpu.memory_space<vmem>>, %arg6: memref<1x17xf32, #tpu.memory_space<vmem>>) attributes {dimension_semantics = [#tpu.dimension_semantics<parallel>, #tpu.dimension_semantics<arbitrary>], iteration_bounds = array<i64: 2, 1>, scalar_prefetch = 0 : i64, scratch_operands = 2 : i64, tpu.core_type = #tpu.core_type<tc>, window_params = [{transform_indices = @transform_0, window_bounds = array<i64: 1, 4, 16, 17>}, {transform_indices = @transform_1, window_bounds = array<i64: 1, 1, 17>}, {transform_indices = @transform_2, window_bounds = array<i64: 1, 1, 17>}]} {
    %c0_i32 = arith.constant 0 : i32
    %0 = arith.cmpi eq, %arg1, %c0_i32 : i32
    %1 = arith.extui %0 : i1 to i32
    %c0_i32_0 = arith.constant 0 : i32
    %2 = arith.cmpi ne, %1, %c0_i32_0 : i32
    scf.if %2 {
      %cst_15 = arith.constant 0.000000e+00 : f32
      %18 = vector.broadcast %cst_15 : f32 to vector<1x17xf32>
      %c0_16 = arith.constant 0 : index
      %c0_17 = arith.constant 0 : index
      %19 = vector.load %arg5[%c0_16, %c0_17] : memref<1x17xf32, #tpu.memory_space<vmem>>, vector<1x17xf32>
      tpu.vector_store %arg5[%c0_16, %c0_17], %18 {strides = array<i32>} : memref<1x17xf32, #tpu.memory_space<vmem>>, vector<1x17xf32>,
      %cst_18 = arith.constant 0xFF800000 : f32
      %20 = vector.broadcast %cst_18 : f32 to vector<1x17xf32>
      %c0_19 = arith.constant 0 : index
      %c0_20 = arith.constant 0 : index
      %21 = vector.load %arg6[%c0_19, %c0_20] : memref<1x17xf32, #tpu.memory_space<vmem>>, vector<1x17xf32>
      tpu.vector_store %arg6[%c0_19, %c0_20], %20 {strides = array<i32>} : memref<1x17xf32, #tpu.memory_space<vmem>>, vector<1x17xf32>,
    } else {
    }
    %c0 = arith.constant 0 : index
    %c0_1 = arith.constant 0 : index
    %c0_2 = arith.constant 0 : index
    %c0_3 = arith.constant 0 : index
    %3 = vector.load %arg2[%c0, %c0_1, %c0_2, %c0_3] : memref<1x4x16x17xf32, #tpu.memory_space<vmem>>, vector<1x4x16x17xf32>
    %4 = vector.shape_cast %3 : vector<1x4x16x17xf32> to vector<64x17xf32>
    %c0_4 = arith.constant 0 : index
    %c0_5 = arith.constant 0 : index
    %5 = vector.load %arg5[%c0_4, %c0_5] : memref<1x17xf32, #tpu.memory_space<vmem>>, vector<1x17xf32>
    %cst = arith.constant dense<0.000000e+00> : vector<17xf32>
    %6 = vector.multi_reduction <add>, %4, %cst [0] : vector<64x17xf32> to vector<17xf32>
    %7 = vector.shape_cast %6 : vector<17xf32> to vector<1x17xf32>
    %8 = arith.addf %5, %7 : vector<1x17xf32>
    %c0_6 = arith.constant 0 : index
    %c0_7 = arith.constant 0 : index
    %9 = vector.load %arg5[%c0_6, %c0_7] : memref<1x17xf32, #tpu.memory_space<vmem>>, vector<1x17xf32>
    tpu.vector_store %arg5[%c0_6, %c0_7], %8 {strides = array<i32>} : memref<1x17xf32, #tpu.memory_space<vmem>>, vector<1x17xf32>,
    %c0_8 = arith.constant 0 : index
    %c0_9 = arith.constant 0 : index
    %10 = vector.load %arg6[%c0_8, %c0_9] : memref<1x17xf32, #tpu.memory_space<vmem>>, vector<1x17xf32>
    %cst_10 = arith.constant dense<0xFF800000> : vector<17xf32>
    %11 = vector.multi_reduction <maximumf>, %4, %cst_10 [0] : vector<64x17xf32> to vector<17xf32>
    %12 = vector.shape_cast %11 : vector<17xf32> to vector<1x17xf32>
    %13 = arith.maximumf %10, %12 : vector<1x17xf32>
    %c0_11 = arith.constant 0 : index
    %c0_12 = arith.constant 0 : index
    %14 = vector.load %arg6[%c0_11, %c0_12] : memref<1x17xf32, #tpu.memory_space<vmem>>, vector<1x17xf32>
    tpu.vector_store %arg6[%c0_11, %c0_12], %13 {strides = array<i32>} : memref<1x17xf32, #tpu.memory_space<vmem>>, vector<1x17xf32>,
    %c0_i32_13 = arith.constant 0 : i32
    %15 = arith.cmpi eq, %arg1, %c0_i32_13 : i32
    %16 = arith.extui %15 : i1 to i32
    %c0_i32_14 = arith.constant 0 : i32
    %17 = arith.cmpi ne, %16, %c0_i32_14 : i32
    scf.if %17 {
      %c0_15 = arith.constant 0 : index
      %c0_16 = arith.constant 0 : index
      %18 = vector.load %arg5[%c0_15, %c0_16] : memref<1x17xf32, #tpu.memory_space<vmem>>, vector<1x17xf32>
      %cst_17 = arith.constant 1.562500e-02 : f32
      %19 = vector.broadcast %cst_17 : f32 to vector<1x17xf32>
      %20 = arith.mulf %18, %19 : vector<1x17xf32>
      %21 = vector.shape_cast %20 : vector<1x17xf32> to vector<1x1x17xf32>
      %c0_18 = arith.constant 0 : index
      %c0_19 = arith.constant 0 : index
      %c0_20 = arith.constant 0 : index
      %22 = vector.load %arg3[%c0_18, %c0_19, %c0_20] : memref<1x1x17xf32, #tpu.memory_space<vmem>>, vector<1x1x17xf32>
      tpu.vector_store %arg3[%c0_18, %c0_19, %c0_20], %21 {strides = array<i32>} : memref<1x1x17xf32, #tpu.memory_space<vmem>>, vector<1x1x17xf32>,
      %c0_21 = arith.constant 0 : index
      %c0_22 = arith.constant 0 : index
      %23 = vector.load %arg6[%c0_21, %c0_22] : memref<1x17xf32, #tpu.memory_space<vmem>>, vector<1x17xf32>
      %24 = vector.shape_cast %23 : vector<1x17xf32> to vector<1x1x17xf32>
      %c0_23 = arith.constant 0 : index
      %c0_24 = arith.constant 0 : index
      %c0_25 = arith.constant 0 : index
      %25 = vector.load %arg4[%c0_23, %c0_24, %c0_25] : memref<1x1x17xf32, #tpu.memory_space<vmem>>, vector<1x1x17xf32>
      tpu.vector_store %arg4[%c0_23, %c0_24, %c0_25], %24 {strides = array<i32>} : memref<1x1x17xf32, #tpu.memory_space<vmem>>, vector<1x1x17xf32>,
    } else {
    }
    return
  }
  func.func @transform_0(%arg0: i32, %arg1: i32) -> (i32, i32, i32, i32) {
    %c0_i32 = arith.constant 0 : i32
    %c0_i32_0 = arith.constant 0 : i32
    %c0_i32_1 = arith.constant 0 : i32
    return %arg0, %c0_i32, %arg1, %c0_i32_0 : i32, i32, i32, i32
  }
  func.func @transform_1(%arg0: i32, %arg1: i32) -> (i32, i32, i32) {
    %c0_i32 = arith.constant 0 : i32
    %c0_i32_0 = arith.constant 0 : i32
    %c0_i32_1 = arith.constant 0 : i32
    return %arg0, %c0_i32, %c0_i32_0 : i32, i32, i32
  }
  func.func @transform_2(%arg0: i32, %arg1: i32) -> (i32, i32, i32) {
    %c0_i32 = arith.constant 0 : i32
    %c0_i32_0 = arith.constant 0 : i32
    %c0_i32_1 = arith.constant 0 : i32
    return %arg0, %c0_i32, %c0_i32_0 : i32, i32, i32
  }
}

module attributes {stable_mosaic.version = 11 : i64} {
  func.func @kernel(%arg0: memref<3xf32, #tpu.memory_space<smem>>, %arg1: memref<2x17xf32, #tpu.memory_space<vmem>>, %arg2: memref<2x17xf32, #tpu.memory_space<vmem>>, %arg3: memref<1x17xf32, #tpu.memory_space<vmem>>, %arg4: memref<1x17xf32, #tpu.memory_space<vmem>>, %arg5: memref<17x544xf32, #tpu.memory_space<vmem>>, %arg6: memref<1x544xf32, #tpu.memory_space<vmem>>, %arg7: memref<17x544xf32, #tpu.memory_space<vmem>>, %arg8: memref<1x544xf32, #tpu.memory_space<vmem>>, %arg9: memref<544x17xf32, #tpu.memory_space<vmem>>, %arg10: memref<17x8xf32, #tpu.memory_space<vmem>>, %arg11: memref<1x8xf32, #tpu.memory_space<vmem>>, %arg12: memref<8x17xf32, #tpu.memory_space<vmem>>, %arg13: memref<1x17xf32, #tpu.memory_space<vmem>>, %arg14: memref<2x17xf32, #tpu.memory_space<vmem>>) attributes {dimension_semantics = [], scalar_prefetch = 0 : i64, scratch_operands = 0 : i64, tpu.core_type = #tpu.core_type<tc>} {
    %c0 = arith.constant 0 : index
    %c0_0 = arith.constant 0 : index
    %0 = vector.load %arg1[%c0, %c0_0] : memref<2x17xf32, #tpu.memory_space<vmem>>, vector<2x17xf32>
    %c0_1 = arith.constant 0 : index
    %1 = memref.load %arg0[%c0_1] : memref<3xf32, #tpu.memory_space<smem>>
    %2 = vector.broadcast %1 : f32 to vector<2x17xf32>
    %3 = arith.mulf %0, %2 : vector<2x17xf32>
    %c0_2 = arith.constant 0 : index
    %c0_3 = arith.constant 0 : index
    %4 = vector.load %arg2[%c0_2, %c0_3] : memref<2x17xf32, #tpu.memory_space<vmem>>, vector<2x17xf32>
    %c1 = arith.constant 1 : index
    %5 = memref.load %arg0[%c1] : memref<3xf32, #tpu.memory_space<smem>>
    %6 = vector.broadcast %5 : f32 to vector<2x17xf32>
    %7 = arith.mulf %4, %6 : vector<2x17xf32>
    %8 = arith.addf %3, %7 : vector<2x17xf32>
    %c2 = arith.constant 2 : index
    %9 = memref.load %arg0[%c2] : memref<3xf32, #tpu.memory_space<smem>>
    %10 = vector.broadcast %9 : f32 to vector<2x17xf32>
    %11 = arith.addf %8, %10 : vector<2x17xf32>
    %cst = arith.constant 0.000000e+00 : f32
    %12 = vector.broadcast %cst : f32 to vector<2x17xf32>
    %13 = arith.maximumf %11, %12 : vector<2x17xf32>
    %cst_4 = arith.constant dense<0.000000e+00> : vector<2xf32>
    %14 = vector.multi_reduction <add>, %13, %cst_4 [1] : vector<2x17xf32> to vector<2xf32>
    %15 = vector.shape_cast %14 : vector<2xf32> to vector<2x1xf32>
    %cst_5 = arith.constant 1.700000e+01 : f32
    %16 = vector.broadcast %cst_5 : f32 to vector<2x1xf32>
    %17 = arith.divf %15, %16 : vector<2x1xf32>
    %18 = vector.broadcast %17 : vector<2x1xf32> to vector<2x17xf32>
    %19 = arith.subf %13, %18 : vector<2x17xf32>
    %20 = arith.mulf %19, %19 : vector<2x17xf32>
    %cst_6 = arith.constant dense<0.000000e+00> : vector<2xf32>
    %21 = vector.multi_reduction <add>, %20, %cst_6 [1] : vector<2x17xf32> to vector<2xf32>
    %22 = vector.shape_cast %21 : vector<2xf32> to vector<2x1xf32>
    %cst_7 = arith.constant 1.700000e+01 : f32
    %23 = vector.broadcast %cst_7 : f32 to vector<2x1xf32>
    %24 = arith.divf %22, %23 : vector<2x1xf32>
    %25 = vector.broadcast %17 : vector<2x1xf32> to vector<2x17xf32>
    %26 = arith.subf %13, %25 : vector<2x17xf32>
    %cst_8 = arith.constant 9.99999974E-6 : f32
    %27 = vector.broadcast %cst_8 : f32 to vector<2x1xf32>
    %28 = arith.addf %24, %27 : vector<2x1xf32>
    %29 = math.rsqrt %28 : vector<2x1xf32>
    %30 = vector.broadcast %29 : vector<2x1xf32> to vector<2x17xf32>
    %31 = arith.mulf %26, %30 : vector<2x17xf32>
    %c0_9 = arith.constant 0 : index
    %c0_10 = arith.constant 0 : index
    %32 = vector.load %arg3[%c0_9, %c0_10] : memref<1x17xf32, #tpu.memory_space<vmem>>, vector<1x17xf32>
    %33 = vector.broadcast %32 : vector<1x17xf32> to vector<2x17xf32>
    %34 = arith.mulf %31, %33 : vector<2x17xf32>
    %c0_11 = arith.constant 0 : index
    %c0_12 = arith.constant 0 : index
    %35 = vector.load %arg4[%c0_11, %c0_12] : memref<1x17xf32, #tpu.memory_space<vmem>>, vector<1x17xf32>
    %36 = vector.broadcast %35 : vector<1x17xf32> to vector<2x17xf32>
    %37 = arith.addf %34, %36 : vector<2x17xf32>
    %c0_13 = arith.constant 0 : index
    %c0_14 = arith.constant 0 : index
    %38 = vector.load %arg5[%c0_13, %c0_14] : memref<17x544xf32, #tpu.memory_space<vmem>>, vector<17x544xf32>
    %cst_15 = arith.constant dense<0.000000e+00> : vector<2x544xf32>
    %39 = tpu.matmul %37, %38, %cst_15 {dimension_numbers = #tpu.dot_dimension_numbers<[1], [0], [0], [1], [0, 0, 1, 1], [], []>} : vector<2x17xf32>, vector<17x544xf32>, vector<2x544xf32> -> vector<2x544xf32>
    %c0_16 = arith.constant 0 : index
    %c0_17 = arith.constant 0 : index
    %40 = vector.load %arg6[%c0_16, %c0_17] : memref<1x544xf32, #tpu.memory_space<vmem>>, vector<1x544xf32>
    %41 = vector.broadcast %40 : vector<1x544xf32> to vector<2x544xf32>
    %42 = arith.addf %39, %41 : vector<2x544xf32>
    %c0_18 = arith.constant 0 : index
    %c0_19 = arith.constant 0 : index
    %43 = vector.load %arg7[%c0_18, %c0_19] : memref<17x544xf32, #tpu.memory_space<vmem>>, vector<17x544xf32>
    %cst_20 = arith.constant dense<0.000000e+00> : vector<2x544xf32>
    %44 = tpu.matmul %37, %43, %cst_20 {dimension_numbers = #tpu.dot_dimension_numbers<[1], [0], [0], [1], [0, 0, 1, 1], [], []>} : vector<2x17xf32>, vector<17x544xf32>, vector<2x544xf32> -> vector<2x544xf32>
    %c0_21 = arith.constant 0 : index
    %c0_22 = arith.constant 0 : index
    %45 = vector.load %arg8[%c0_21, %c0_22] : memref<1x544xf32, #tpu.memory_space<vmem>>, vector<1x544xf32>
    %46 = vector.broadcast %45 : vector<1x544xf32> to vector<2x544xf32>
    %47 = arith.addf %44, %46 : vector<2x544xf32>
    %48 = arith.mulf %42, %47 : vector<2x544xf32>
    %c0_23 = arith.constant 0 : index
    %c0_24 = arith.constant 0 : index
    %49 = vector.load %arg9[%c0_23, %c0_24] : memref<544x17xf32, #tpu.memory_space<vmem>>, vector<544x17xf32>
    %cst_25 = arith.constant dense<0.000000e+00> : vector<2x17xf32>
    %50 = tpu.matmul %48, %49, %cst_25 {dimension_numbers = #tpu.dot_dimension_numbers<[1], [0], [0], [1], [0, 0, 1, 1], [], []>} : vector<2x544xf32>, vector<544x17xf32>, vector<2x17xf32> -> vector<2x17xf32>
    %cst_26 = arith.constant 0.176776692 : f32
    %51 = vector.broadcast %cst_26 : f32 to vector<2x17xf32>
    %52 = arith.mulf %50, %51 : vector<2x17xf32>
    %53 = arith.subf %52, %52 : vector<2x17xf32>
    %54 = math.exp %53 : vector<2x17xf32>
    %c0_27 = arith.constant 0 : index
    %c0_28 = arith.constant 0 : index
    %55 = vector.load %arg10[%c0_27, %c0_28] : memref<17x8xf32, #tpu.memory_space<vmem>>, vector<17x8xf32>
    %cst_29 = arith.constant dense<0.000000e+00> : vector<2x8xf32>
    %56 = tpu.matmul %54, %55, %cst_29 {dimension_numbers = #tpu.dot_dimension_numbers<[1], [0], [0], [1], [0, 0, 1, 1], [], []>} : vector<2x17xf32>, vector<17x8xf32>, vector<2x8xf32> -> vector<2x8xf32>
    %c0_30 = arith.constant 0 : index
    %c0_31 = arith.constant 0 : index
    %57 = vector.load %arg11[%c0_30, %c0_31] : memref<1x8xf32, #tpu.memory_space<vmem>>, vector<1x8xf32>
    %58 = vector.broadcast %57 : vector<1x8xf32> to vector<2x8xf32>
    %59 = arith.addf %56, %58 : vector<2x8xf32>
    %cst_32 = arith.constant 0.000000e+00 : f32
    %60 = vector.broadcast %cst_32 : f32 to vector<2x8xf32>
    %61 = arith.maximumf %59, %60 : vector<2x8xf32>
    %c0_33 = arith.constant 0 : index
    %c0_34 = arith.constant 0 : index
    %62 = vector.load %arg12[%c0_33, %c0_34] : memref<8x17xf32, #tpu.memory_space<vmem>>, vector<8x17xf32>
    %cst_35 = arith.constant dense<0.000000e+00> : vector<2x17xf32>
    %63 = tpu.matmul %61, %62, %cst_35 {dimension_numbers = #tpu.dot_dimension_numbers<[1], [0], [0], [1], [0, 0, 1, 1], [], []>} : vector<2x8xf32>, vector<8x17xf32>, vector<2x17xf32> -> vector<2x17xf32>
    %c0_36 = arith.constant 0 : index
    %c0_37 = arith.constant 0 : index
    %64 = vector.load %arg13[%c0_36, %c0_37] : memref<1x17xf32, #tpu.memory_space<vmem>>, vector<1x17xf32>
    %65 = vector.broadcast %64 : vector<1x17xf32> to vector<2x17xf32>
    %66 = arith.addf %63, %65 : vector<2x17xf32>
    %cst_38 = arith.constant dense<0xFF800000> : vector<2xf32>
    %67 = vector.multi_reduction <maximumf>, %66, %cst_38 [1] : vector<2x17xf32> to vector<2xf32>
    %68 = vector.shape_cast %67 : vector<2xf32> to vector<2x1xf32>
    %69 = vector.broadcast %68 : vector<2x1xf32> to vector<2x17xf32>
    %70 = arith.subf %66, %69 : vector<2x17xf32>
    %71 = math.exp %70 : vector<2x17xf32>
    %cst_39 = arith.constant dense<0.000000e+00> : vector<2xf32>
    %72 = vector.multi_reduction <add>, %71, %cst_39 [1] : vector<2x17xf32> to vector<2xf32>
    %73 = vector.shape_cast %72 : vector<2xf32> to vector<2x1xf32>
    %74 = vector.broadcast %73 : vector<2x1xf32> to vector<2x17xf32>
    %75 = arith.divf %71, %74 : vector<2x17xf32>
    %c0_40 = arith.constant 0 : index
    %c0_41 = arith.constant 0 : index
    %76 = vector.load %arg14[%c0_40, %c0_41] : memref<2x17xf32, #tpu.memory_space<vmem>>, vector<2x17xf32>
    tpu.vector_store %arg14[%c0_40, %c0_41], %75 {strides = array<i32>} : memref<2x17xf32, #tpu.memory_space<vmem>>, vector<2x17xf32>,
    return
  }
}

module attributes {stable_mosaic.version = 11 : i64} {
  func.func @kernel(%arg0: i32, %arg1: i32, %arg2: memref<1x4x272xf32, #tpu.memory_space<vmem>>, %arg3: memref<1x1x272xf32, #tpu.memory_space<vmem>>, %arg4: memref<1x4x1xf32, #tpu.memory_space<vmem>>, %arg5: memref<1x4x1xf32, #tpu.memory_space<vmem>>, %arg6: memref<1x4x272xf32, #tpu.memory_space<vmem>>) attributes {dimension_semantics = [#tpu.dimension_semantics<parallel>, #tpu.dimension_semantics<parallel>], iteration_bounds = array<i64: 2, 1>, scalar_prefetch = 0 : i64, scratch_operands = 0 : i64, tpu.core_type = #tpu.core_type<tc>, window_params = [{transform_indices = @transform_0, window_bounds = array<i64: 1, 4, 272>}, {transform_indices = @transform_1, window_bounds = array<i64: 1, 1, 272>}, {transform_indices = @transform_2, window_bounds = array<i64: 1, 4, 1>}, {transform_indices = @transform_3, window_bounds = array<i64: 1, 4, 1>}, {transform_indices = @transform_4, window_bounds = array<i64: 1, 4, 272>}]} {
    %c0 = arith.constant 0 : index
    %c0_0 = arith.constant 0 : index
    %c0_1 = arith.constant 0 : index
    %0 = vector.load %arg2[%c0, %c0_0, %c0_1] : memref<1x4x272xf32, #tpu.memory_space<vmem>>, vector<1x4x272xf32>
    %c0_2 = arith.constant 0 : index
    %c0_3 = arith.constant 0 : index
    %c0_4 = arith.constant 0 : index
    %1 = vector.load %arg3[%c0_2, %c0_3, %c0_4] : memref<1x1x272xf32, #tpu.memory_space<vmem>>, vector<1x1x272xf32>
    %2 = vector.broadcast %1 : vector<1x1x272xf32> to vector<1x4x272xf32>
    %3 = arith.mulf %0, %2 : vector<1x4x272xf32>
    %c0_5 = arith.constant 0 : index
    %c0_6 = arith.constant 0 : index
    %c0_7 = arith.constant 0 : index
    %4 = vector.load %arg4[%c0_5, %c0_6, %c0_7] : memref<1x4x1xf32, #tpu.memory_space<vmem>>, vector<1x4x1xf32>
    %5 = vector.broadcast %4 : vector<1x4x1xf32> to vector<1x4x272xf32>
    %6 = arith.mulf %3, %5 : vector<1x4x272xf32>
    %c0_8 = arith.constant 0 : index
    %c0_9 = arith.constant 0 : index
    %c0_10 = arith.constant 0 : index
    %7 = vector.load %arg5[%c0_8, %c0_9, %c0_10] : memref<1x4x1xf32, #tpu.memory_space<vmem>>, vector<1x4x1xf32>
    %8 = vector.broadcast %7 : vector<1x4x1xf32> to vector<1x4x272xf32>
    %9 = arith.addf %6, %8 : vector<1x4x272xf32>
    %10 = arith.addf %9, %0 : vector<1x4x272xf32>
    %cst = arith.constant 0.000000e+00 : f32
    %11 = vector.broadcast %cst : f32 to vector<1x4x272xf32>
    %12 = arith.maximumf %10, %11 : vector<1x4x272xf32>
    %c0_11 = arith.constant 0 : index
    %c0_12 = arith.constant 0 : index
    %c0_13 = arith.constant 0 : index
    %13 = vector.load %arg6[%c0_11, %c0_12, %c0_13] : memref<1x4x272xf32, #tpu.memory_space<vmem>>, vector<1x4x272xf32>
    tpu.vector_store %arg6[%c0_11, %c0_12, %c0_13], %12 {strides = array<i32>} : memref<1x4x272xf32, #tpu.memory_space<vmem>>, vector<1x4x272xf32>,
    return
  }
  func.func @transform_0(%arg0: i32, %arg1: i32) -> (i32, i32, i32) {
    %c0_i32 = arith.constant 0 : i32
    %c0_i32_0 = arith.constant 0 : i32
    return %arg0, %arg1, %c0_i32 : i32, i32, i32
  }
  func.func @transform_1(%arg0: i32, %arg1: i32) -> (i32, i32, i32) {
    %c0_i32 = arith.constant 0 : i32
    %c0_i32_0 = arith.constant 0 : i32
    %c0_i32_1 = arith.constant 0 : i32
    return %arg0, %c0_i32, %c0_i32_0 : i32, i32, i32
  }
  func.func @transform_2(%arg0: i32, %arg1: i32) -> (i32, i32, i32) {
    %c0_i32 = arith.constant 0 : i32
    %c0_i32_0 = arith.constant 0 : i32
    %c0_i32_1 = arith.constant 0 : i32
    return %c0_i32, %arg1, %c0_i32_0 : i32, i32, i32
  }
  func.func @transform_3(%arg0: i32, %arg1: i32) -> (i32, i32, i32) {
    %c0_i32 = arith.constant 0 : i32
    %c0_i32_0 = arith.constant 0 : i32
    %c0_i32_1 = arith.constant 0 : i32
    return %c0_i32, %arg1, %c0_i32_0 : i32, i32, i32
  }
  func.func @transform_4(%arg0: i32, %arg1: i32) -> (i32, i32, i32) {
    %c0_i32 = arith.constant 0 : i32
    %c0_i32_0 = arith.constant 0 : i32
    return %arg0, %arg1, %c0_i32 : i32, i32, i32
  }
}

</mosaic_0001>

<llo_original>
// kernel: joint_att_forward.3
$region0: #{joint_att_forward.3}
  #allocation0 [shape = 'u32[]', space=smem, size = 0x4, offset = 0x4, fixed_abs, tag = 'smem constant byte address 0x4 - core index']
  #allocation1 [shape = 'u32[144,128]{1,0:T(1,128)}', space=vmem, size = 0x12000, scoped, tag = 'internal scratch']
  #allocation2 [shape = 'f32[1,17]{1,0:T(1,128)}', space=vmem, size = 0x200, scoped, tag = 'scratch operand']
  #allocation3 [shape = 'f32[1,17]{1,0:T(1,128)}', space=vmem, size = 0x200, scoped, tag = 'scratch operand']
  %s0 = inlined_call_operand.vmem [shape: f32[2,4,16,17], index: 0, kind: input, shape index: {}]
  %s1 = inlined_call_operand.vmem [shape: f32[2,1,17], index: 1, kind: output, shape index: {0}]
  %s2 = inlined_call_operand.vmem [shape: f32[2,1,17], index: 2, kind: output, shape index: {1}]
  %3 = xla_tuple %s1, %s2
  %s4 = sld [smem:[#allocation0]]
  $region53: #{joint_att_forward.3} parent=0
    _
  %s6 = ssub.s32 1, %s4
  %s7 = scalar_select 0, %s6, %s4
  loop: start=0, step=1, limit=4
  $region2: #{joint_att_forward.3} parent=0 // loop_pre_header
    _
  $region3: #{joint_att_forward.3} parent=0 // loop_header
    %s9 = sphi 0, %s13
    %p10 = scmp.ge.s32.totalorder %s9, 4
    %s16 = sphi 0, %s28
    %s17 = sphi 0, %s24
    %s18 = sphi 0, %s16
    %s19 = sphi 0, %s17
    %s20 = sphi 0, %s18
    %s21 = sphi 0, %s19
    %s33 = sphi 0, %s35
    %s36 = sphi 0, %s33
    %s37 = sphi 0, %s36
    %s53 = sphi 0, %s37
    %s59 = sphi 0, %s61
    %s62 = sphi 0, %s59
    %s63 = sphi 0, %s62
    %s79 = sphi 0, %s63
    %s85 = sphi 0, %s87
    %s88 = sphi 0, %s85
    %s89 = sphi 0, %s88
    %s105 = sphi 0, %s89
  $region4: #{joint_att_forward.3} parent=0 // loop_header_branch
    %12 = sbr.rel (%p10) target = $region8
  $region5: #{joint_att_forward.3} parent=0 // loop_body
    %s14 = ssub.s32 %s9, 1
    %s15 = ssub.s32 %s9, 2
    %s22 = sadd.s32 1, %s17
    %p23 = scmp.ge.s32.totalorder %s22, 1
    %s24 = scalar_select %p23, 0, %s22
    %s25 = sadd.s32 1, %s16
    %s26 = scalar_select %p23, %s25, %s16
    %p27 = scmp.ge.s32.totalorder %s26, 2
    %s28 = scalar_select %p27, 0, %s26
    %s29 = ssub.s32 %s16, %s28
    %s30 = ssub.s32 %s17, %s24
    %s31 = sor.u32 %s29, %s30
    %p32 = scmp.eq.s32.totalorder %s31, 0
    %s34 = sadd.s32 %s33, 1
    %s35 = scalar_select %p32, %s33, %s34
    %p38 = pneg %p32
    %p39 = scmp.eq.s32.totalorder %s9, 1
    %p40 = por %p38, %p39
    %p41 = scmp.ne.s32.totalorder %s33, %s36
    %p42 = scmp.eq.s32.totalorder %s9, 0
    %p43 = por %p41, %p42
    %p44 = scmp.ne.s32.totalorder %s33, %s36
    %p45 = scmp.eq.s32.totalorder %s14, 1
    %p46 = por %p44, %p45
    %p47 = scmp.ne.s32.totalorder %s36, %s37
    %p48 = scmp.eq.s32.totalorder %s14, 0
    %p49 = por %p47, %p48
    %p50 = scmp.ne.s32.totalorder %s36, %s37
    %p51 = scmp.eq.s32.totalorder %s15, 1
    %p52 = por %p50, %p51
    %p54 = scmp.ne.s32.totalorder %s37, %s53
    %p55 = scmp.eq.s32.totalorder %s15, 0
    %p56 = por %p54, %p55
    %s57 = ssub.s32 %s16, %s28
    %p58 = scmp.eq.s32.totalorder %s57, 0
    %s60 = sadd.s32 %s59, 1
    %s61 = scalar_select %p58, %s59, %s60
    %p64 = pneg %p58
    %p65 = scmp.eq.s32.totalorder %s9, 1
    %p66 = por %p64, %p65
    %p67 = scmp.ne.s32.totalorder %s59, %s62
    %p68 = scmp.eq.s32.totalorder %s9, 0
    %p69 = por %p67, %p68
    %p70 = scmp.ne.s32.totalorder %s59, %s62
    %p71 = scmp.eq.s32.totalorder %s14, 1
    %p72 = por %p70, %p71
    %p73 = scmp.ne.s32.totalorder %s62, %s63
    %p74 = scmp.eq.s32.totalorder %s14, 0
    %p75 = por %p73, %p74
    %p76 = scmp.ne.s32.totalorder %s62, %s63
    %p77 = scmp.eq.s32.totalorder %s15, 1
    %p78 = por %p76, %p77
    %p80 = scmp.ne.s32.totalorder %s63, %s79
    %p81 = scmp.eq.s32.totalorder %s15, 0
    %p82 = por %p80, %p81
    %s83 = ssub.s32 %s16, %s28
    %p84 = scmp.eq.s32.totalorder %s83, 0
    %s86 = sadd.s32 %s85, 1
    %s87 = scalar_select %p84, %s85, %s86
    %p90 = pneg %p84
    %p91 = scmp.eq.s32.totalorder %s9, 1
    %p92 = por %p90, %p91
    %p93 = scmp.ne.s32.totalorder %s85, %s88
    %p94 = scmp.eq.s32.totalorder %s9, 0
    %p95 = por %p93, %p94
    %p96 = scmp.ne.s32.totalorder %s85, %s88
    %p97 = scmp.eq.s32.totalorder %s14, 1
    %p98 = por %p96, %p97
    %p99 = scmp.ne.s32.totalorder %s88, %s89
    %p100 = scmp.eq.s32.totalorder %s14, 0
    %p101 = por %p99, %p100
    %p102 = scmp.ne.s32.totalorder %s88, %s89
    %p103 = scmp.eq.s32.totalorder %s15, 1
    %p104 = por %p102, %p103
    %p106 = scmp.ne.s32.totalorder %s89, %s105
    %p107 = scmp.eq.s32.totalorder %s15, 0
    %p108 = por %p106, %p107
    %p109 = scmp.le.s32.totalorder 1, %s9
    %p110 = scmp.lt.s32.totalorder %s9, 3
    %p111 = pnand %p109, %p110
    %p112 = pneg %p111
    // Predicated region
    $region9: #{joint_att_forward.3} parent=5 // pred_check
      _
    $region10: #{joint_att_forward.3} parent=5 // pred_check_branch
      %114 = sbr.rel (%p111) target = $region12
    $region11: #{joint_att_forward.3} parent=5 // pred_region
      %s115 = ssub.s32 %s9, 1
    $region12: #{joint_att_forward.3} parent=5 // pred_fallthru
      _
    %p116 = scmp.lt.s32.totalorder %s9, 2
    // Predicated region
    $region13: #{joint_att_forward.3} parent=5 // pred_check
      %p117 = pneg %p116
    $region14: #{joint_att_forward.3} parent=5 // pred_check_branch
      %119 = sbr.rel (%p117) target = $region16
    $region15: #{joint_att_forward.3} parent=5 // pred_region
      // Predicated region
      $region17: #{joint_att_forward.3} parent=15 // pred_check
        %p120 = pneg %p43
      $region18: #{joint_att_forward.3} parent=15 // pred_check_branch
        %122 = sbr.rel (%p120) target = $region20
      $region19: #{joint_att_forward.3} parent=15 // pred_region
        %s123 = smul.u32 2, %s17
        %p124 = scmp.lt.s32.totalorder %s16, 1
        %s125 = scalar_select %p124, %s16, 1
        %p126 = scmp.lt.s32.totalorder %s123, 1
        %s127 = scalar_select %p126, %s123, 1
        %s128 = smul.addr %s125, 8
        %s129 = sadd.s32 %s127, %s128
        %s130 = smul.addr %s129, 8
        %s131 = scalar_lea.vmem %s0, %s130
        %s132 = smul.u32 2, %s17
      $region20: #{joint_att_forward.3} parent=15 // pred_fallthru
        _
    $region16: #{joint_att_forward.3} parent=5 // pred_fallthru
      _
    %p133 = scmp.le.s32.totalorder 1, %s9
    %p134 = scmp.lt.s32.totalorder %s9, 3
    %p135 = pnand %p133, %p134
    %p136 = pneg %p135
    // Predicated region
    $region21: #{joint_att_forward.3} parent=5 // pred_check
      _
    $region22: #{joint_att_forward.3} parent=5 // pred_check_branch
      %138 = sbr.rel (%p135) target = $region24
    $region23: #{joint_att_forward.3} parent=5 // pred_region
      %s139 = ssub.s32 %s9, 1
      %s140 = smul.u32 2, %s19
      %p141 = scmp.lt.s32.totalorder %s18, 1
      %s142 = scalar_select %p141, %s18, 1
      %p143 = scmp.lt.s32.totalorder %s140, 1
      %s144 = scalar_select %p143, %s140, 1
      %s145 = smul.addr %s142, 8
      %s146 = sadd.s32 %s144, %s145
      %s147 = smul.addr %s146, 8
      %s148 = scalar_lea.vmem %s0, %s147
      %p149 = pneg %p49
      %p150 = pneg %p46
      %p151 = pneg %p75
      %p152 = pneg %p72
      %p153 = scmp.lt.s32.totalorder %s18, 1
      %s154 = scalar_select %p153, %s18, 1
      %s155 = scalar_lea.vmem %s1, %s154
      %p156 = pneg %p101
      %p157 = pneg %p98
      %p158 = scmp.lt.s32.totalorder %s18, 1
      %s159 = scalar_select %p158, %s18, 1
      %s160 = scalar_lea.vmem %s2, %s159
      %s161 = smul.u32 2, %s19
      %p162 = scmp.lt.s32.totalorder %s18, 1
      %s163 = scalar_select %p162, %s18, 1
      %p164 = scmp.lt.s32.totalorder %s161, 1
      %s165 = scalar_select %p164, %s161, 1
      %s166 = smul.addr %s163, 8
      %s167 = sadd.s32 %s165, %s166
      %s168 = smul.addr %s167, 8
      %s169 = scalar_lea.vmem %s0, %s168
      %s170 = smul.u32 2, %s19
      %p171 = scmp.lt.s32.totalorder %s18, 1
      %s172 = scalar_select %p171, %s18, 1
      %s173 = scalar_lea.vmem %s1, %s172
      %p174 = scmp.lt.s32.totalorder %s18, 1
      %s175 = scalar_select %p174, %s18, 1
      %s176 = scalar_lea.vmem %s2, %s175
      %p177 = scmp.eq.s32.totalorder %s19, 0
      // Predicated region
      $region25: #{joint_att_forward.3} parent=23 // pred_check
        %p178 = pneg %p177
      $region26: #{joint_att_forward.3} parent=23 // pred_check_branch
        %180 = sbr.rel (%p178) target = $region28
      $region27: #{joint_att_forward.3} parent=23 // pred_region
        %vm181 = vcmask 131072
        %182 = vst.msk [vmem:[#allocation2] sm:$0x1] %vm181, 0.0
        %183 = vst.msk [vmem:[#allocation3] sm:$0x1] %vm181, -inf
      $region28: #{joint_att_forward.3} parent=23 // pred_fallthru
        _
      %v184 = vld [vmem:[%s169] sm:$0xff]
      %v185 = vld [vmem:[%s169 + $0x8] sm:$0xff]
      %v186 = vld [vmem:[%s169 + $0x10] sm:$0xff]
      %v187 = vld [vmem:[%s169 + $0x18] sm:$0xff]
      %v188 = vld [vmem:[%s169 + $0x20] sm:$0xff]
      %v189 = vld [vmem:[%s169 + $0x28] sm:$0xff]
      %v190 = vld [vmem:[%s169 + $0x30] sm:$0xff]
      %v191 = vld [vmem:[%s169 + $0x38] sm:$0xff]
      %v192 = vld [vmem:[#allocation2] sm:$0x1]
      %vm193 = vcmask 138240
      %v194 = vsel %vm193, %v184, 0.0
      %v195 = vsel %vm193, %v185, 0.0
      %v196 = vadd.f32 %v194, %v195
      %v197 = vsel %vm193, %v186, 0.0
      %v198 = vadd.f32 %v196, %v197
      %v199 = vsel %vm193, %v187, 0.0
      %v200 = vadd.f32 %v198, %v199
      %v201 = vsel %vm193, %v188, 0.0
      %v202 = vadd.f32 %v200, %v201
      %v203 = vsel %vm193, %v189, 0.0
      %v204 = vadd.f32 %v202, %v203
      %v205 = vsel %vm193, %v190, 0.0
      %v206 = vadd.f32 %v204, %v205
      %v207 = vsel %vm193, %v191, 0.0
      %v208 = vadd.f32 %v206, %v207
      %v209 = vrot.slane %v208, 4
      %v210 = vadd.f32 %v208, %v209
      %v211 = vrot.slane %v210, 2
      %v212 = vadd.f32 %v210, %v211
      %v213 = vrot.slane %v212, 1
      %v214 = vadd.f32 %v212, %v213
      %v215 = vadd.f32 %v192, %v214
      %vm216 = vcmask 131072
      %217 = vst.msk [vmem:[#allocation2] sm:$0x1] %vm216, %v215
      %v218 = vld [vmem:[#allocation3] sm:$0x1]
      %v219 = vsel %vm193, %v184, -inf
      %v220 = vsel %vm193, %v185, -inf
      %v221 = vsel %vm193, %v186, -inf
      %v222 = vsel %vm193, %v187, -inf
      %v223 = vsel %vm193, %v188, -inf
      %v224 = vmax.f32 %v219, %v223
      %v225 = vsel %vm193, %v189, -inf
      %v226 = vmax.f32 %v220, %v225
      %v227 = vsel %vm193, %v190, -inf
      %v228 = vmax.f32 %v221, %v227
      %v229 = vsel %vm193, %v191, -inf
      %v230 = vmax.f32 %v222, %v229
      %v231 = vmax.f32 %v224, %v226
      %v232 = vmax.f32 %v228, %v230
      %v233 = vmax.f32 %v231, %v232
      %v234 = vrot.slane %v233, 4
      %v235 = vmax.f32 %v233, %v234
      %v236 = vrot.slane %v235, 2
      %v237 = vmax.f32 %v235, %v236
      %v238 = vrot.slane %v237, 1
      %v239 = vmax.f32 %v237, %v238
      %v240 = vmax.f32 %v218, %v239
      %241 = vst.msk [vmem:[#allocation3] sm:$0x1] %vm216, %v240
      // Predicated region
      $region29: #{joint_att_forward.3} parent=23 // pred_check
        %p242 = pneg %p177
      $region30: #{joint_att_forward.3} parent=23 // pred_check_branch
        %244 = sbr.rel (%p242) target = $region32
      $region31: #{joint_att_forward.3} parent=23 // pred_region
        %v245 = vld [vmem:[#allocation2] sm:$0x1]
        %v246 = vmul.f32 %v245, 0.015625
        %247 = vst.msk [vmem:[%s173] sm:$0x1] %vm216, %v246
        %v248 = vld [vmem:[#allocation3] sm:$0x1]
        %249 = vst.msk [vmem:[%s176] sm:$0x1] %vm216, %v248
      $region32: #{joint_att_forward.3} parent=23 // pred_fallthru
        _
      %p250 = scmp.lt.s32.totalorder %s18, 1
      %s251 = scalar_select %p250, %s18, 1
      %s252 = scalar_lea.vmem %s1, %s251
      %p253 = scmp.lt.s32.totalorder %s18, 1
      %s254 = scalar_select %p253, %s18, 1
      %s255 = scalar_lea.vmem %s2, %s254
      // Predicated region
      $region33: #{joint_att_forward.3} parent=23 // pred_check
        %p256 = pneg %p72
      $region34: #{joint_att_forward.3} parent=23 // pred_check_branch
        %258 = sbr.rel (%p256) target = $region36
      $region35: #{joint_att_forward.3} parent=23 // pred_region
        _
      $region36: #{joint_att_forward.3} parent=23 // pred_fallthru
        _
      // Predicated region
      $region37: #{joint_att_forward.3} parent=23 // pred_check
        %p259 = pneg %p98
      $region38: #{joint_att_forward.3} parent=23 // pred_check_branch
        %261 = sbr.rel (%p259) target = $region40
      $region39: #{joint_att_forward.3} parent=23 // pred_region
        _
      $region40: #{joint_att_forward.3} parent=23 // pred_fallthru
        _
    $region24: #{joint_att_forward.3} parent=5 // pred_fallthru
      _
    %p262 = scmp.le.s32.totalorder 2, %s9
    // Predicated region
    $region41: #{joint_att_forward.3} parent=5 // pred_check
      %p263 = pneg %p262
    $region42: #{joint_att_forward.3} parent=5 // pred_check_branch
      %265 = sbr.rel (%p263) target = $region44
    $region43: #{joint_att_forward.3} parent=5 // pred_region
      %s266 = ssub.s32 %s9, 2
      // Predicated region
      $region45: #{joint_att_forward.3} parent=43 // pred_check
        %p267 = pneg %p78
      $region46: #{joint_att_forward.3} parent=43 // pred_check_branch
        %269 = sbr.rel (%p267) target = $region48
      $region47: #{joint_att_forward.3} parent=43 // pred_region
        %p270 = scmp.lt.s32.totalorder %s20, 1
        %s271 = scalar_select %p270, %s20, 1
        %s272 = scalar_lea.vmem %s1, %s271
      $region48: #{joint_att_forward.3} parent=43 // pred_fallthru
        _
      // Predicated region
      $region49: #{joint_att_forward.3} parent=43 // pred_check
        %p273 = pneg %p104
      $region50: #{joint_att_forward.3} parent=43 // pred_check_branch
        %275 = sbr.rel (%p273) target = $region52
      $region51: #{joint_att_forward.3} parent=43 // pred_region
        %p276 = scmp.lt.s32.totalorder %s20, 1
        %s277 = scalar_select %p276, %s20, 1
        %s278 = scalar_lea.vmem %s2, %s277
      $region52: #{joint_att_forward.3} parent=43 // pred_fallthru
        _
    $region44: #{joint_att_forward.3} parent=5 // pred_fallthru
      _
  $region6: #{joint_att_forward.3} parent=0 // loop_footer
    %s13 = sadd.s32 1, %s9
  $region7: #{joint_att_forward.3} parent=0 // loop_footer_branch
    %8 = sbr.rel target = $region3
  $region8: #{joint_att_forward.3} parent=0 // loop_exit
    _

// kernel: joint_att_forward.5
$region0: #{joint_att_forward.5}
  #allocation0 [shape = 'u32[]', space=smem, size = 0x4, offset = 0x4, fixed_abs, tag = 'smem constant byte address 0x4 - core index']
  #allocation1 [shape = 'u32[144,128]{1,0:T(1,128)}', space=vmem, size = 0x12000, scoped, tag = 'internal scratch']
  %s0 = inlined_call_operand.vmem [shape: f32[2,4,272], index: 0, kind: input, shape index: {}]
  %s1 = inlined_call_operand.vmem [shape: f32[2,1,272], index: 1, kind: input, shape index: {}]
  %s2 = inlined_call_operand.vmem [shape: f32[1,4,1], index: 2, kind: input, shape index: {}]
  %s3 = inlined_call_operand.vmem [shape: f32[1,4,1], index: 3, kind: input, shape index: {}]
  %s4 = inlined_call_operand.vmem [shape: f32[2,4,272], index: 4, kind: output, shape index: {}]
  %s5 = sld [smem:[#allocation0]]
  $region49: #{joint_att_forward.5} parent=0
    _
  %s7 = ssub.s32 1, %s5
  %s8 = scalar_select 0, %s7, %s5
  loop: start=0, step=1, limit=4
  $region2: #{joint_att_forward.5} parent=0 // loop_pre_header
    _
  $region3: #{joint_att_forward.5} parent=0 // loop_header
    %s10 = sphi 0, %s14
    %p11 = scmp.ge.s32.totalorder %s10, 4
    %s17 = sphi 0, %s29
    %s18 = sphi 0, %s25
    %s19 = sphi 0, %s17
    %s20 = sphi 0, %s18
    %s21 = sphi 0, %s19
    %s22 = sphi 0, %s20
    %s34 = sphi 0, %s36
    %s37 = sphi 0, %s34
    %s38 = sphi 0, %s37
    %s54 = sphi 0, %s38
    %s60 = sphi 0, %s62
    %s63 = sphi 0, %s60
    %s64 = sphi 0, %s63
    %s80 = sphi 0, %s64
    %s86 = sphi 0, %s88
    %s89 = sphi 0, %s86
    %s90 = sphi 0, %s89
    %s106 = sphi 0, %s90
    %s112 = sphi 0, %s114
    %s115 = sphi 0, %s112
    %s116 = sphi 0, %s115
    %s132 = sphi 0, %s116
    %s140 = sphi 0, %s142
    %s143 = sphi 0, %s140
    %s144 = sphi 0, %s143
    %s160 = sphi 0, %s144
  $region4: #{joint_att_forward.5} parent=0 // loop_header_branch
    %13 = sbr.rel (%p11) target = $region8
  $region5: #{joint_att_forward.5} parent=0 // loop_body
    %s15 = ssub.s32 %s10, 1
    %s16 = ssub.s32 %s10, 2
    %s23 = sadd.s32 1, %s18
    %p24 = scmp.ge.s32.totalorder %s23, 1
    %s25 = scalar_select %p24, 0, %s23
    %s26 = sadd.s32 1, %s17
    %s27 = scalar_select %p24, %s26, %s17
    %p28 = scmp.ge.s32.totalorder %s27, 2
    %s29 = scalar_select %p28, 0, %s27
    %s30 = ssub.s32 %s17, %s29
    %s31 = ssub.s32 %s18, %s25
    %s32 = sor.u32 %s30, %s31
    %p33 = scmp.eq.s32.totalorder %s32, 0
    %s35 = sadd.s32 %s34, 1
    %s36 = scalar_select %p33, %s34, %s35
    %p39 = pneg %p33
    %p40 = scmp.eq.s32.totalorder %s10, 1
    %p41 = por %p39, %p40
    %p42 = scmp.ne.s32.totalorder %s34, %s37
    %p43 = scmp.eq.s32.totalorder %s10, 0
    %p44 = por %p42, %p43
    %p45 = scmp.ne.s32.totalorder %s34, %s37
    %p46 = scmp.eq.s32.totalorder %s15, 1
    %p47 = por %p45, %p46
    %p48 = scmp.ne.s32.totalorder %s37, %s38
    %p49 = scmp.eq.s32.totalorder %s15, 0
    %p50 = por %p48, %p49
    %p51 = scmp.ne.s32.totalorder %s37, %s38
    %p52 = scmp.eq.s32.totalorder %s16, 1
    %p53 = por %p51, %p52
    %p55 = scmp.ne.s32.totalorder %s38, %s54
    %p56 = scmp.eq.s32.totalorder %s16, 0
    %p57 = por %p55, %p56
    %s58 = ssub.s32 %s17, %s29
    %p59 = scmp.eq.s32.totalorder %s58, 0
    %s61 = sadd.s32 %s60, 1
    %s62 = scalar_select %p59, %s60, %s61
    %p65 = pneg %p59
    %p66 = scmp.eq.s32.totalorder %s10, 1
    %p67 = por %p65, %p66
    %p68 = scmp.ne.s32.totalorder %s60, %s63
    %p69 = scmp.eq.s32.totalorder %s10, 0
    %p70 = por %p68, %p69
    %p71 = scmp.ne.s32.totalorder %s60, %s63
    %p72 = scmp.eq.s32.totalorder %s15, 1
    %p73 = por %p71, %p72
    %p74 = scmp.ne.s32.totalorder %s63, %s64
    %p75 = scmp.eq.s32.totalorder %s15, 0
    %p76 = por %p74, %p75
    %p77 = scmp.ne.s32.totalorder %s63, %s64
    %p78 = scmp.eq.s32.totalorder %s16, 1
    %p79 = por %p77, %p78
    %p81 = scmp.ne.s32.totalorder %s64, %s80
    %p82 = scmp.eq.s32.totalorder %s16, 0
    %p83 = por %p81, %p82
    %s84 = ssub.s32 %s18, %s25
    %p85 = scmp.eq.s32.totalorder %s84, 0
    %s87 = sadd.s32 %s86, 1
    %s88 = scalar_select %p85, %s86, %s87
    %p91 = pneg %p85
    %p92 = scmp.eq.s32.totalorder %s10, 1
    %p93 = por %p91, %p92
    %p94 = scmp.ne.s32.totalorder %s86, %s89
    %p95 = scmp.eq.s32.totalorder %s10, 0
    %p96 = por %p94, %p95
    %p97 = scmp.ne.s32.totalorder %s86, %s89
    %p98 = scmp.eq.s32.totalorder %s15, 1
    %p99 = por %p97, %p98
    %p100 = scmp.ne.s32.totalorder %s89, %s90
    %p101 = scmp.eq.s32.totalorder %s15, 0
    %p102 = por %p100, %p101
    %p103 = scmp.ne.s32.totalorder %s89, %s90
    %p104 = scmp.eq.s32.totalorder %s16, 1
    %p105 = por %p103, %p104
    %p107 = scmp.ne.s32.totalorder %s90, %s106
    %p108 = scmp.eq.s32.totalorder %s16, 0
    %p109 = por %p107, %p108
    %s110 = ssub.s32 %s18, %s25
    %p111 = scmp.eq.s32.totalorder %s110, 0
    %s113 = sadd.s32 %s112, 1
    %s114 = scalar_select %p111, %s112, %s113
    %p117 = pneg %p111
    %p118 = scmp.eq.s32.totalorder %s10, 1
    %p119 = por %p117, %p118
    %p120 = scmp.ne.s32.totalorder %s112, %s115
    %p121 = scmp.eq.s32.totalorder %s10, 0
    %p122 = por %p120, %p121
    %p123 = scmp.ne.s32.totalorder %s112, %s115
    %p124 = scmp.eq.s32.totalorder %s15, 1
    %p125 = por %p123, %p124
    %p126 = scmp.ne.s32.totalorder %s115, %s116
    %p127 = scmp.eq.s32.totalorder %s15, 0
    %p128 = por %p126, %p127
    %p129 = scmp.ne.s32.totalorder %s115, %s116
    %p130 = scmp.eq.s32.totalorder %s16, 1
    %p131 = por %p129, %p130
    %p133 = scmp.ne.s32.totalorder %s116, %s132
    %p134 = scmp.eq.s32.totalorder %s16, 0
    %p135 = por %p133, %p134
    %s136 = ssub.s32 %s17, %s29
    %s137 = ssub.s32 %s18, %s25
    %s138 = sor.u32 %s136, %s137
    %p139 = scmp.eq.s32.totalorder %s138, 0
    %s141 = sadd.s32 %s140, 1
    %s142 = scalar_select %p139, %s140, %s141
    %p145 = pneg %p139
    %p146 = scmp.eq.s32.totalorder %s10, 1
    %p147 = por %p145, %p146
    %p148 = scmp.ne.s32.totalorder %s140, %s143
    %p149 = scmp.eq.s32.totalorder %s10, 0
    %p150 = por %p148, %p149
    %p151 = scmp.ne.s32.totalorder %s140, %s143
    %p152 = scmp.eq.s32.totalorder %s15, 1
    %p153 = por %p151, %p152
    %p154 = scmp.ne.s32.totalorder %s143, %s144
    %p155 = scmp.eq.s32.totalorder %s15, 0
    %p156 = por %p154, %p155
    %p157 = scmp.ne.s32.totalorder %s143, %s144
    %p158 = scmp.eq.s32.totalorder %s16, 1
    %p159 = por %p157, %p158
    %p161 = scmp.ne.s32.totalorder %s144, %s160
    %p162 = scmp.eq.s32.totalorder %s16, 0
    %p163 = por %p161, %p162
    %p164 = scmp.le.s32.totalorder 1, %s10
    %p165 = scmp.lt.s32.totalorder %s10, 3
    %p166 = pnand %p164, %p165
    %p167 = pneg %p166
    // Predicated region
    $region9: #{joint_att_forward.5} parent=5 // pred_check
      _
    $region10: #{joint_att_forward.5} parent=5 // pred_check_branch
      %169 = sbr.rel (%p166) target = $region12
    $region11: #{joint_att_forward.5} parent=5 // pred_region
      %s170 = ssub.s32 %s10, 1
      // Predicated region
      $region13: #{joint_att_forward.5} parent=11 // pred_check
        %p171 = pneg %p102
      $region14: #{joint_att_forward.5} parent=11 // pred_check_branch
        %173 = sbr.rel (%p171) target = $region16
      $region15: #{joint_att_forward.5} parent=11 // pred_region
        %p174 = scmp.lt.s32.totalorder %s20, 0
        %s175 = scalar_select %p174, %s20, 0
        %s176 = smul.addr %s175, 4
        %s177 = scalar_lea.vmem %s2, %s176
      $region16: #{joint_att_forward.5} parent=11 // pred_fallthru
        _
      // Predicated region
      $region17: #{joint_att_forward.5} parent=11 // pred_check
        %p178 = pneg %p128
      $region18: #{joint_att_forward.5} parent=11 // pred_check_branch
        %180 = sbr.rel (%p178) target = $region20
      $region19: #{joint_att_forward.5} parent=11 // pred_region
        %p181 = scmp.lt.s32.totalorder %s20, 0
        %s182 = scalar_select %p181, %s20, 0
        %s183 = smul.addr %s182, 4
        %s184 = scalar_lea.vmem %s3, %s183
      $region20: #{joint_att_forward.5} parent=11 // pred_fallthru
        _
    $region12: #{joint_att_forward.5} parent=5 // pred_fallthru
      _
    %p185 = scmp.lt.s32.totalorder %s10, 2
    // Predicated region
    $region21: #{joint_att_forward.5} parent=5 // pred_check
      %p186 = pneg %p185
    $region22: #{joint_att_forward.5} parent=5 // pred_check_branch
      %188 = sbr.rel (%p186) target = $region24
    $region23: #{joint_att_forward.5} parent=5 // pred_region
      // Predicated region
      $region25: #{joint_att_forward.5} parent=23 // pred_check
        %p189 = pneg %p44
      $region26: #{joint_att_forward.5} parent=23 // pred_check_branch
        %191 = sbr.rel (%p189) target = $region28
      $region27: #{joint_att_forward.5} parent=23 // pred_region
        %p192 = scmp.lt.s32.totalorder %s17, 1
        %s193 = scalar_select %p192, %s17, 1
        %p194 = scmp.lt.s32.totalorder %s18, 0
        %s195 = scalar_select %p194, %s18, 0
        %s196 = smul.addr %s195, 3
        %s197 = smul.addr %s193, 3
        %s198 = sadd.s32 %s196, %s197
        %s199 = smul.addr %s198, 4
        %s200 = scalar_lea.vmem %s0, %s199
      $region28: #{joint_att_forward.5} parent=23 // pred_fallthru
        _
      // Predicated region
      $region29: #{joint_att_forward.5} parent=23 // pred_check
        %p201 = pneg %p70
      $region30: #{joint_att_forward.5} parent=23 // pred_check_branch
        %203 = sbr.rel (%p201) target = $region32
      $region31: #{joint_att_forward.5} parent=23 // pred_region
        %p204 = scmp.lt.s32.totalorder %s17, 1
        %s205 = scalar_select %p204, %s17, 1
        %s206 = smul.addr %s205, 3
        %s207 = scalar_lea.vmem %s1, %s206
      $region32: #{joint_att_forward.5} parent=23 // pred_fallthru
        _
    $region24: #{joint_att_forward.5} parent=5 // pred_fallthru
      _
    %p208 = scmp.le.s32.totalorder 1, %s10
    %p209 = scmp.lt.s32.totalorder %s10, 3
    %p210 = pnand %p208, %p209
    %p211 = pneg %p210
    // Predicated region
    $region33: #{joint_att_forward.5} parent=5 // pred_check
      _
    $region34: #{joint_att_forward.5} parent=5 // pred_check_branch
      %213 = sbr.rel (%p210) target = $region36
    $region35: #{joint_att_forward.5} parent=5 // pred_region
      %s214 = ssub.s32 %s10, 1
      %p215 = scmp.lt.s32.totalorder %s19, 1
      %s216 = scalar_select %p215, %s19, 1
      %p217 = scmp.lt.s32.totalorder %s20, 0
      %s218 = scalar_select %p217, %s20, 0
      %s219 = smul.addr %s218, 3
      %s220 = smul.addr %s216, 3
      %s221 = sadd.s32 %s219, %s220
      %s222 = smul.addr %s221, 4
      %s223 = scalar_lea.vmem %s0, %s222
      %p224 = pneg %p50
      %p225 = pneg %p47
      %p226 = scmp.lt.s32.totalorder %s19, 1
      %s227 = scalar_select %p226, %s19, 1
      %s228 = smul.addr %s227, 3
      %s229 = scalar_lea.vmem %s1, %s228
      %p230 = pneg %p76
      %p231 = pneg %p73
      %p232 = scmp.lt.s32.totalorder %s20, 0
      %s233 = scalar_select %p232, %s20, 0
      %s234 = smul.addr %s233, 4
      %s235 = scalar_lea.vmem %s2, %s234
      %p236 = pneg %p102
      %p237 = pneg %p99
      %p238 = scmp.lt.s32.totalorder %s20, 0
      %s239 = scalar_select %p238, %s20, 0
      %s240 = smul.addr %s239, 4
      %s241 = scalar_lea.vmem %s3, %s240
      %p242 = pneg %p128
      %p243 = pneg %p125
      %p244 = pneg %p156
      %p245 = pneg %p153
      %p246 = scmp.lt.s32.totalorder %s19, 1
      %s247 = scalar_select %p246, %s19, 1
      %p248 = scmp.lt.s32.totalorder %s20, 0
      %s249 = scalar_select %p248, %s20, 0
      %s250 = smul.addr %s249, 3
      %s251 = smul.addr %s247, 3
      %s252 = sadd.s32 %s250, %s251
      %s253 = smul.addr %s252, 4
      %s254 = scalar_lea.vmem %s4, %s253
      %p255 = scmp.lt.s32.totalorder %s19, 1
      %s256 = scalar_select %p255, %s19, 1
      %p257 = scmp.lt.s32.totalorder %s20, 0
      %s258 = scalar_select %p257, %s20, 0
      %s259 = smul.addr %s258, 3
      %s260 = smul.addr %s256, 3
      %s261 = sadd.s32 %s259, %s260
      %s262 = smul.addr %s261, 4
      %s263 = scalar_lea.vmem %s0, %s262
      %p264 = scmp.lt.s32.totalorder %s19, 1
      %s265 = scalar_select %p264, %s19, 1
      %s266 = smul.addr %s265, 3
      %s267 = scalar_lea.vmem %s1, %s266
      %p268 = scmp.lt.s32.totalorder %s20, 0
      %s269 = scalar_select %p268, %s20, 0
      %s270 = smul.addr %s269, 4
      %s271 = scalar_lea.vmem %s2, %s270
      %p272 = scmp.lt.s32.totalorder %s20, 0
      %s273 = scalar_select %p272, %s20, 0
      %s274 = smul.addr %s273, 4
      %s275 = scalar_lea.vmem %s3, %s274
      %p276 = scmp.lt.s32.totalorder %s19, 1
      %s277 = scalar_select %p276, %s19, 1
      %p278 = scmp.lt.s32.totalorder %s20, 0
      %s279 = scalar_select %p278, %s20, 0
      %s280 = smul.addr %s279, 3
      %s281 = smul.addr %s277, 3
      %s282 = sadd.s32 %s280, %s281
      %s283 = smul.addr %s282, 4
      %s284 = scalar_lea.vmem %s4, %s283
      %v285 = vld [vmem:[%s263] sm:$0xff]
      %v286 = vld [vmem:[%s263 + $0x8] sm:$0xf]
      %v287 = vld [vmem:[%s267] sm:$0x7]
      %v289 = vlaneseq
      %v290 = vshrl.u32 %v289, 7
      %v291 = vsub.s32 0, %v290
      %v292 = vrot.slane %v287, %v291
      %v293 = vlaneseq
      %v294 = vshrl.u32 %v293, 7
      %v295 = vsub.s32 1, %v294
      %v296 = vrot.slane %v287, %v295
      %v297 = vlaneseq
      %v298 = vshrl.u32 %v297, 7
      %v299 = vsub.s32 2, %v298
      %v300 = vrot.slane %v287, %v299
      %v302 = vcombine.low %v292, %v296
      %v304 = vmul.f32 %v285, %v302
      %v305 = vmul.f32 %v286, %v300
      %v306 = vld [vmem:[%s271] sm:$0xf]
      %308 = vset.pattern.permute.xlu0 0
      %309 = vperm.xlu0 %308, %v306
      %v310 = vpop.permute.xlu0 %309
      %v312 = vunpack.c.l.s4 839922192
      %v313 = vunpack.c.0.s8 %v312
      %v314 = vlaneseq
      %v315 = vshrl.u32 %v314, 7
      %v316 = vsub.s32 %v313, %v315
      %v317 = vrot.slane %v310, %v316
      %v319 = vmul.f32 %v304, %v317
      %v320 = vmul.f32 %v305, %v317
      %v321 = vld [vmem:[%s275] sm:$0xf]
      %323 = vset.pattern.permute.xlu0 0
      %324 = vperm.xlu0 %323, %v321
      %v325 = vpop.permute.xlu0 %324
      %v327 = vunpack.c.l.s4 839922192
      %v328 = vunpack.c.0.s8 %v327
      %v329 = vlaneseq
      %v330 = vshrl.u32 %v329, 7
      %v331 = vsub.s32 %v328, %v330
      %v332 = vrot.slane %v325, %v331
      %v334 = vadd.f32 %v319, %v332
      %v335 = vadd.f32 %v320, %v332
      %v336 = vadd.f32 %v334, %v285
      %v337 = vadd.f32 %v335, %v286
      %v338 = vmax.f32 %v336, 0.0
      %v339 = vmax.f32 %v337, 0.0
      %340 = vst [vmem:[%s284] sm:$0xff] %v338
      %vm341 = vcmask 125952
      %342 = vst.msk [vmem:[%s284 + $0x8] sm:$0xf] %vm341, %v339
      %p343 = scmp.lt.s32.totalorder %s19, 1
      %s344 = scalar_select %p343, %s19, 1
      %p345 = scmp.lt.s32.totalorder %s20, 0
      %s346 = scalar_select %p345, %s20, 0
      %s347 = smul.addr %s346, 3
      %s348 = smul.addr %s344, 3
      %s349 = sadd.s32 %s347, %s348
      %s350 = smul.addr %s349, 4
      %s351 = scalar_lea.vmem %s4, %s350
      // Predicated region
      $region37: #{joint_att_forward.5} parent=35 // pred_check
        %p352 = pneg %p153
      $region38: #{joint_att_forward.5} parent=35 // pred_check_branch
        %354 = sbr.rel (%p352) target = $region40
      $region39: #{joint_att_forward.5} parent=35 // pred_region
        _
      $region40: #{joint_att_forward.5} parent=35 // pred_fallthru
        _
    $region36: #{joint_att_forward.5} parent=5 // pred_fallthru
      _
    %p355 = scmp.le.s32.totalorder 2, %s10
    // Predicated region
    $region41: #{joint_att_forward.5} parent=5 // pred_check
      %p356 = pneg %p355
    $region42: #{joint_att_forward.5} parent=5 // pred_check_branch
      %358 = sbr.rel (%p356) target = $region44
    $region43: #{joint_att_forward.5} parent=5 // pred_region
      %s359 = ssub.s32 %s10, 2
      // Predicated region
      $region45: #{joint_att_forward.5} parent=43 // pred_check
        %p360 = pneg %p159
      $region46: #{joint_att_forward.5} parent=43 // pred_check_branch
        %362 = sbr.rel (%p360) target = $region48
      $region47: #{joint_att_forward.5} parent=43 // pred_region
        %p363 = scmp.lt.s32.totalorder %s21, 1
        %s364 = scalar_select %p363, %s21, 1
        %p365 = scmp.lt.s32.totalorder %s22, 0
        %s366 = scalar_select %p365, %s22, 0
        %s367 = smul.addr %s366, 3
        %s368 = smul.addr %s364, 3
        %s369 = sadd.s32 %s367, %s368
        %s370 = smul.addr %s369, 4
        %s371 = scalar_lea.vmem %s4, %s370
      $region48: #{joint_att_forward.5} parent=43 // pred_fallthru
        _
    $region44: #{joint_att_forward.5} parent=5 // pred_fallthru
      _
  $region6: #{joint_att_forward.5} parent=0 // loop_footer
    %s14 = sadd.s32 1, %s10
  $region7: #{joint_att_forward.5} parent=0 // loop_footer_branch
    %9 = sbr.rel target = $region3
  $region8: #{joint_att_forward.5} parent=0 // loop_exit
    _

// kernel: joint_att_forward.4
$region0: #{joint_att_forward.4}
  #allocation0 [shape = 'u32[]', space=smem, size = 0x4, offset = 0x4, fixed_abs, tag = 'smem constant byte address 0x4 - core index']
  #allocation1 [shape = 'u32[144,128]{1,0:T(1,128)}', space=vmem, size = 0x12000, scoped, tag = 'internal scratch']
  %s0 = inlined_call_operand.vmem [shape: f32[3], index: 0, kind: input, shape index: {}]
  %s1 = inlined_call_operand.vmem [shape: f32[2,17], index: 1, kind: input, shape index: {}]
  %s2 = inlined_call_operand.vmem [shape: f32[2,17], index: 2, kind: input, shape index: {}]
  %s3 = inlined_call_operand.vmem [shape: f32[1,17], index: 3, kind: input, shape index: {}]
  %s4 = inlined_call_operand.vmem [shape: f32[1,17], index: 4, kind: input, shape index: {}]
  %s5 = inlined_call_operand.vmem [shape: f32[17,544], index: 5, kind: input, shape index: {}]
  %s6 = inlined_call_operand.vmem [shape: f32[1,544], index: 6, kind: input, shape index: {}]
  %s7 = inlined_call_operand.vmem [shape: f32[17,544], index: 7, kind: input, shape index: {}]
  %s8 = inlined_call_operand.vmem [shape: f32[1,544], index: 8, kind: input, shape index: {}]
  %s9 = inlined_call_operand.vmem [shape: f32[544,17], index: 9, kind: input, shape index: {}]
  %s10 = inlined_call_operand.vmem [shape: f32[17,8], index: 10, kind: input, shape index: {}]
  %s11 = inlined_call_operand.vmem [shape: f32[1,8], index: 11, kind: input, shape index: {}]
  %s12 = inlined_call_operand.vmem [shape: f32[8,17], index: 12, kind: input, shape index: {}]
  %s13 = inlined_call_operand.vmem [shape: f32[1,17], index: 13, kind: input, shape index: {}]
  %s14 = inlined_call_operand.vmem [shape: f32[2,17], index: 14, kind: output, shape index: {}]
  %s15 = sld [smem:[#allocation0]]
  $region70: #{joint_att_forward.4} parent=0
    _
  %s17 = ssub.s32 1, %s15
  %s18 = scalar_select 0, %s17, %s15
  $region1: #{joint_att_forward.4} parent=0
    #allocation2 [shape = 'u8[512]{0}', space=smem, size = 0x200, scoped, tag = 'input window, operand 0, single buffered']
    #allocation3 [shape = 's32[1]{0}', space=sflag, size = 0x4, scoped, tag = 'scoped memory for joint_att_forward.4']
    %19 = vsyncpa [#allocation3], 0
    // Predicated region
    $region2: #{joint_att_forward.4} parent=1 // pred_check
      _
    $region3: #{joint_att_forward.4} parent=1 // pred_check_branch
      %21 = sbr.rel (0) target = $region5
    $region4: #{joint_att_forward.4} parent=1 // pred_region
      %s23 = ssub.s32 16, 16
      %24 = vsyncadd [#allocation3], %s23
      %s26 = sshll.u32 %s0, 4
      %s27 = int_to_ptr.vmem [resolvable:$true] %s26
      %29 = dma.vmem_to_smem %s27, 16, [#allocation2], [#allocation3]
    $region5: #{joint_att_forward.4} parent=1 // pred_fallthru
      _
    // Predicated region
    $region6: #{joint_att_forward.4} parent=1 // pred_check
      _
    $region7: #{joint_att_forward.4} parent=1 // pred_check_branch
      %31 = sbr.rel (0) target = $region9
    $region8: #{joint_att_forward.4} parent=1 // pred_region
      _
    $region9: #{joint_att_forward.4} parent=1 // pred_fallthru
      _
    // Predicated region
    $region10: #{joint_att_forward.4} parent=1 // pred_check
      _
    $region11: #{joint_att_forward.4} parent=1 // pred_check_branch
      %33 = sbr.rel (0) target = $region13
    $region12: #{joint_att_forward.4} parent=1 // pred_region
      _
    $region13: #{joint_att_forward.4} parent=1 // pred_fallthru
      _
    // Predicated region
    $region14: #{joint_att_forward.4} parent=1 // pred_check
      _
    $region15: #{joint_att_forward.4} parent=1 // pred_check_branch
      %35 = sbr.rel (0) target = $region17
    $region16: #{joint_att_forward.4} parent=1 // pred_region
      _
    $region17: #{joint_att_forward.4} parent=1 // pred_fallthru
      _
    // Predicated region
    $region18: #{joint_att_forward.4} parent=1 // pred_check
      _
    $region19: #{joint_att_forward.4} parent=1 // pred_check_branch
      %37 = sbr.rel (0) target = $region21
    $region20: #{joint_att_forward.4} parent=1 // pred_region
      _
    $region21: #{joint_att_forward.4} parent=1 // pred_fallthru
      _
    // Predicated region
    $region22: #{joint_att_forward.4} parent=1 // pred_check
      _
    $region23: #{joint_att_forward.4} parent=1 // pred_check_branch
      %39 = sbr.rel (0) target = $region25
    $region24: #{joint_att_forward.4} parent=1 // pred_region
      _
    $region25: #{joint_att_forward.4} parent=1 // pred_fallthru
      _
    // Predicated region
    $region26: #{joint_att_forward.4} parent=1 // pred_check
      _
    $region27: #{joint_att_forward.4} parent=1 // pred_check_branch
      %41 = sbr.rel (0) target = $region29
    $region28: #{joint_att_forward.4} parent=1 // pred_region
      _
    $region29: #{joint_att_forward.4} parent=1 // pred_fallthru
      _
    // Predicated region
    $region30: #{joint_att_forward.4} parent=1 // pred_check
      _
    $region31: #{joint_att_forward.4} parent=1 // pred_check_branch
      %43 = sbr.rel (0) target = $region33
    $region32: #{joint_att_forward.4} parent=1 // pred_region
      _
    $region33: #{joint_att_forward.4} parent=1 // pred_fallthru
      _
    // Predicated region
    $region34: #{joint_att_forward.4} parent=1 // pred_check
      _
    $region35: #{joint_att_forward.4} parent=1 // pred_check_branch
      %45 = sbr.rel (0) target = $region37
    $region36: #{joint_att_forward.4} parent=1 // pred_region
      _
    $region37: #{joint_att_forward.4} parent=1 // pred_fallthru
      _
    // Predicated region
    $region38: #{joint_att_forward.4} parent=1 // pred_check
      _
    $region39: #{joint_att_forward.4} parent=1 // pred_check_branch
      %47 = sbr.rel (0) target = $region41
    $region40: #{joint_att_forward.4} parent=1 // pred_region
      _
    $region41: #{joint_att_forward.4} parent=1 // pred_fallthru
      _
    // Predicated region
    $region42: #{joint_att_forward.4} parent=1 // pred_check
      _
    $region43: #{joint_att_forward.4} parent=1 // pred_check_branch
      %49 = sbr.rel (0) target = $region45
    $region44: #{joint_att_forward.4} parent=1 // pred_region
      _
    $region45: #{joint_att_forward.4} parent=1 // pred_fallthru
      _
    // Predicated region
    $region46: #{joint_att_forward.4} parent=1 // pred_check
      _
    $region47: #{joint_att_forward.4} parent=1 // pred_check_branch
      %51 = sbr.rel (0) target = $region49
    $region48: #{joint_att_forward.4} parent=1 // pred_region
      _
    $region49: #{joint_att_forward.4} parent=1 // pred_fallthru
      _
    // Predicated region
    $region50: #{joint_att_forward.4} parent=1 // pred_check
      _
    $region51: #{joint_att_forward.4} parent=1 // pred_check_branch
      %53 = sbr.rel (0) target = $region53
    $region52: #{joint_att_forward.4} parent=1 // pred_region
      _
    $region53: #{joint_att_forward.4} parent=1 // pred_fallthru
      _
    // Predicated region
    $region54: #{joint_att_forward.4} parent=1 // pred_check
      _
    $region55: #{joint_att_forward.4} parent=1 // pred_check_branch
      %55 = sbr.rel (0) target = $region57
    $region56: #{joint_att_forward.4} parent=1 // pred_region
      _
    $region57: #{joint_att_forward.4} parent=1 // pred_fallthru
      _
    // Predicated region
    $region58: #{joint_att_forward.4} parent=1 // pred_check
      _
    $region59: #{joint_att_forward.4} parent=1 // pred_check_branch
      %57 = sbr.rel (0) target = $region61
    $region60: #{joint_att_forward.4} parent=1 // pred_region
      %58 = dma.done [#allocation3], 16
    $region61: #{joint_att_forward.4} parent=1 // pred_fallthru
      _
    %59 = sfence
    %v60 = vld [vmem:[%s1] sm:$0x3]
    %s61 = sld [smem:[#allocation2]]
    %v62 = vstv %s61
    %v63 = vmul.f32 %v60, %v62
    %v64 = vld [vmem:[%s2] sm:$0x3]
    %s65 = sld [smem:[#allocation2 + $0x1]]
    %v66 = vstv %s65
    %v67 = vmul.f32 %v64, %v66
    %v68 = vadd.f32 %v63, %v67
    %s69 = sld [smem:[#allocation2 + $0x2]]
    %v70 = vstv %s69
    %v71 = vadd.f32 %v68, %v70
    %v72 = vmax.f32 %v71, 0.0
    %vm73 = vcmask 132096
    %v74 = vsel %vm73, %v72, 0.0
    %75 = vadd.xlane.f32.xlu0 %v74
    %v76 = vpop.xlane.xlu0 %75
    %v77 = vrcp.pop 17.0
    %v78 = vmul.f32 %v76, %v77
    %v79 = vsub.f32 %v72, %v78
    %v80 = vmul.f32 %v79, %v79
    %v81 = vsel %vm73, %v80, 0.0
    %82 = vadd.xlane.f32.xlu0 %v81
    %v83 = vpop.xlane.xlu0 %82
    %v84 = vmul.f32 %v83, %v77
    %v85 = vadd.f32 %v84, 1e-05
    %v86 = vrsqrt.pop %v85
    %v87 = vmul.f32 %v79, %v86
    %v88 = vld [vmem:[%s3] sm:$0x1]
    %v90 = vlaneseq
    %v91 = vshrl.u32 %v90, 7
    %v92 = vsub.s32 0, %v91
    %v93 = vrot.slane %v88, %v92
    %v95 = vmul.f32 %v87, %v93
    %v96 = vld [vmem:[%s4] sm:$0x1]
    %v98 = vlaneseq
    %v99 = vshrl.u32 %v98, 7
    %v100 = vsub.s32 0, %v99
    %v101 = vrot.slane %v96, %v100
    %v103 = vadd.f32 %v95, %v101
    %v104 = vld [vmem:[%s5] sm:$0xff]
    %v105 = vld [vmem:[%s5 + $0x8] sm:$0xff]
    %v106 = vld [vmem:[%s5 + $0x10] sm:$0xff]
    %v107 = vld [vmem:[%s5 + $0x18] sm:$0xff]
    %v108 = vld [vmem:[%s5 + $0x20] sm:$0xff]
    %v109 = vld [vmem:[%s5 + $0x28] sm:$0xff]
    %v110 = vld [vmem:[%s5 + $0x30] sm:$0xff]
    %v111 = vld [vmem:[%s5 + $0x38] sm:$0xff]
    %v112 = vld [vmem:[%s5 + $0x40] sm:$0xff]
    %v113 = vld [vmem:[%s5 + $0x48] sm:$0xff]
    %v114 = vld [vmem:[%s5 + $0x50] sm:$0x1]
    %v115 = vld [vmem:[%s5 + $0x58] sm:$0x1]
    %v116 = vld [vmem:[%s5 + $0x60] sm:$0x1]
    %v117 = vld [vmem:[%s5 + $0x68] sm:$0x1]
    %v118 = vld [vmem:[%s5 + $0x70] sm:$0x1]
    %v119 = vld [vmem:[%s6] sm:$0x1f]
    %v121 = vlaneseq
    %v122 = vshrl.u32 %v121, 7
    %v123 = vsub.s32 0, %v122
    %v124 = vrot.slane %v119, %v123
    %v125 = vlaneseq
    %v126 = vshrl.u32 %v125, 7
    %v127 = vsub.s32 1, %v126
    %v128 = vrot.slane %v119, %v127
    %v129 = vlaneseq
    %v130 = vshrl.u32 %v129, 7
    %v131 = vsub.s32 2, %v130
    %v132 = vrot.slane %v119, %v131
    %v133 = vlaneseq
    %v134 = vshrl.u32 %v133, 7
    %v135 = vsub.s32 3, %v134
    %v136 = vrot.slane %v119, %v135
    %v137 = vlaneseq
    %v138 = vshrl.u32 %v137, 7
    %v139 = vsub.s32 4, %v138
    %v140 = vrot.slane %v119, %v139
    %vm146 = vcmask 138240
    %v148 = vsel %vm146, %v103, 0
    %vm150 = vcmask 1040384
    %v152 = vsel %vm150, %v114, 0
    %v155 = vsel %vm150, %v115, 0
    %v158 = vsel %vm150, %v116, 0
    %v161 = vsel %vm150, %v117, 0
    %v164 = vsel %vm150, %v118, 0
    %166 = vmatprep.subr.mxu0 %v105
    %167 = vmatpush1.msra.mxu0 %v104
    %168 = vmatprep.subr.mxu0 %v110
    %169 = vmatpush1.msra.mxu0 %v109
    %170 = vmatprep.subr.mxu0 %v155
    %171 = vmatpush1.msra.mxu0 %v152
    %172 = vmatprep.subr.mxu0 0.0
    %173 = vmatpush1.msra.mxu0 0.0
    %174 = vmatprep.subr.mxu0 0.0
    %175 = vmatpush1.msra.mxu0 0.0
    %176 = vmatprep.subr.mxu0 0.0
    %177 = vmatpush1.msra.mxu0 0.0
    %178 = vmatprep.subr.mxu0 0.0
    %179 = vmatpush1.msra.mxu0 0.0
    %180 = vmatprep.subr.mxu0 0.0
    %181 = vmatpush1.msra.mxu0 0.0
    %182 = vmatprep.subr.mxu0 0.0
    %183 = vmatpush1.msra.mxu0 0.0
    %184 = vmatprep.subr.mxu0 0.0
    %185 = vmatpush1.msra.mxu0 0.0
    %186 = vmatprep.subr.mxu0 0.0
    %187 = vmatpush1.msra.mxu0 0.0
    %188 = vmatprep.subr.mxu0 0.0
    %189 = vmatpush1.msra.mxu0 0.0
    %190 = vmatprep.subr.mxu0 0.0
    %191 = vmatpush1.msra.mxu0 0.0
    %192 = vmatprep.subr.mxu0 0.0
    %193 = vmatpush1.msra.mxu0 0.0
    %194 = vmatprep.subr.mxu0 0.0
    %195 = vmatpush1.msra.mxu0 0.0
    %196 = vmatprep.subr.mxu0 0.0
    %197 = vmatpush1.msra.mxu0 0.0
    %198 = vmatprep.subr.mxu0 0.0
    %199 = vmatpush1.msra.mxu0 0.0
    %200 = vmatprep.subr.mxu0 0.0
    %201 = vmatpush1.msra.mxu0 0.0
    %202 = vmatprep.subr.mxu0 0.0
    %203 = vmatpush1.msra.mxu0 0.0
    %204 = vmatprep.subr.mxu0 0.0
    %205 = vmatpush1.msra.mxu0 0.0
    %206 = vmatprep.subr.mxu0 0.0
    %207 = vmatpush1.msra.mxu0 0.0
    %208 = vmatprep.subr.mxu0 0.0
    %209 = vmatpush1.msra.mxu0 0.0
    %210 = vmatprep.subr.mxu0 0.0
    %211 = vmatpush1.msra.mxu0 0.0
    %212 = vmatprep.subr.mxu0 0.0
    %213 = vmatpush1.msra.mxu0 0.0
    %214 = vmatprep.subr.mxu0 0.0
    %215 = vmatpush1.msra.mxu0 0.0
    %216 = vmatprep.subr.mxu0 0.0
    %217 = vmatpush1.msra.mxu0 0.0
    %218 = vmatprep.subr.mxu0 0.0
    %219 = vmatpush1.msra.mxu0 0.0
    %220 = vmatprep.subr.mxu0 0.0
    %221 = vmatpush1.msra.mxu0 0.0
    %222 = vmatprep.subr.mxu0 0.0
    %223 = vmatpush1.msra.mxu0 0.0
    %224 = vmatprep.subr.mxu0 0.0
    %225 = vmatpush1.msra.mxu0 0.0
    %226 = vmatprep.subr.mxu0 0.0
    %227 = vmatpush1.msra.mxu0 0.0
    %228 = vmatprep.subr.mxu0 0.0
    %229 = vmatpush1.msra.mxu0 0.0
    %230 = vmatprep.mubr.f32.mxu0 0.0
    %231 = vmatmul.mubr.f32.gmra.mrb[0].mxu0 %v148
    %v232 = vpop.f32.mrb[0].mxu0
    %v233 = vadd.f32 %v124, %v232
    %v234 = vpop.f32.mrb[0].mxu0
    %v235 = vadd.f32 %v128, %v234
    %236 = vdwg.mxu0
    %237 = vmatprep.subr.mxu0 %v107
    %238 = vmatpush1.msra.mxu0 %v106
    %239 = vmatprep.subr.mxu0 %v112
    %240 = vmatpush1.msra.mxu0 %v111
    %241 = vmatprep.subr.mxu0 %v161
    %242 = vmatpush1.msra.mxu0 %v158
    %243 = vmatprep.subr.mxu0 0.0
    %244 = vmatpush1.msra.mxu0 0.0
    %245 = vmatprep.subr.mxu0 0.0
    %246 = vmatpush1.msra.mxu0 0.0
    %247 = vmatprep.subr.mxu0 0.0
    %248 = vmatpush1.msra.mxu0 0.0
    %249 = vmatprep.subr.mxu0 0.0
    %250 = vmatpush1.msra.mxu0 0.0
    %251 = vmatprep.subr.mxu0 0.0
    %252 = vmatpush1.msra.mxu0 0.0
    %253 = vmatprep.subr.mxu0 0.0
    %254 = vmatpush1.msra.mxu0 0.0
    %255 = vmatprep.subr.mxu0 0.0
    %256 = vmatpush1.msra.mxu0 0.0
    %257 = vmatprep.subr.mxu0 0.0
    %258 = vmatpush1.msra.mxu0 0.0
    %259 = vmatprep.subr.mxu0 0.0
    %260 = vmatpush1.msra.mxu0 0.0
    %261 = vmatprep.subr.mxu0 0.0
    %262 = vmatpush1.msra.mxu0 0.0
    %263 = vmatprep.subr.mxu0 0.0
    %264 = vmatpush1.msra.mxu0 0.0
    %265 = vmatprep.subr.mxu0 0.0
    %266 = vmatpush1.msra.mxu0 0.0
    %267 = vmatprep.subr.mxu0 0.0
    %268 = vmatpush1.msra.mxu0 0.0
    %269 = vmatprep.subr.mxu0 0.0
    %270 = vmatpush1.msra.mxu0 0.0
    %271 = vmatprep.subr.mxu0 0.0
    %272 = vmatpush1.msra.mxu0 0.0
    %273 = vmatprep.subr.mxu0 0.0
    %274 = vmatpush1.msra.mxu0 0.0
    %275 = vmatprep.subr.mxu0 0.0
    %276 = vmatpush1.msra.mxu0 0.0
    %277 = vmatprep.subr.mxu0 0.0
    %278 = vmatpush1.msra.mxu0 0.0
    %279 = vmatprep.subr.mxu0 0.0
    %280 = vmatpush1.msra.mxu0 0.0
    %281 = vmatprep.subr.mxu0 0.0
    %282 = vmatpush1.msra.mxu0 0.0
    %283 = vmatprep.subr.mxu0 0.0
    %284 = vmatpush1.msra.mxu0 0.0
    %285 = vmatprep.subr.mxu0 0.0
    %286 = vmatpush1.msra.mxu0 0.0
    %287 = vmatprep.subr.mxu0 0.0
    %288 = vmatpush1.msra.mxu0 0.0
    %289 = vmatprep.subr.mxu0 0.0
    %290 = vmatpush1.msra.mxu0 0.0
    %291 = vmatprep.subr.mxu0 0.0
    %292 = vmatpush1.msra.mxu0 0.0
    %293 = vmatprep.subr.mxu0 0.0
    %294 = vmatpush1.msra.mxu0 0.0
    %295 = vmatprep.subr.mxu0 0.0
    %296 = vmatpush1.msra.mxu0 0.0
    %297 = vmatprep.subr.mxu0 0.0
    %298 = vmatpush1.msra.mxu0 0.0
    %299 = vmatprep.subr.mxu0 0.0
    %300 = vmatpush1.msra.mxu0 0.0
    %301 = vmatprep.mubr.f32.mxu0 0.0
    %302 = vmatmul.mubr.f32.gmra.mrb[0].mxu0 %v148
    %v303 = vpop.f32.mrb[0].mxu0
    %v304 = vadd.f32 %v132, %v303
    %v305 = vpop.f32.mrb[0].mxu0
    %v306 = vadd.f32 %v136, %v305
    %307 = vdwg.mxu0
    %308 = vmatprep.subr.mxu0 0.0
    %309 = vmatpush1.msra.mxu0 %v108
    %310 = vmatprep.subr.mxu0 0.0
    %311 = vmatpush1.msra.mxu0 %v113
    %312 = vmatprep.subr.mxu0 0.0
    %313 = vmatpush1.msra.mxu0 %v164
    %314 = vmatprep.subr.mxu0 0.0
    %315 = vmatpush1.msra.mxu0 0.0
    %316 = vmatprep.subr.mxu0 0.0
    %317 = vmatpush1.msra.mxu0 0.0
    %318 = vmatprep.subr.mxu0 0.0
    %319 = vmatpush1.msra.mxu0 0.0
    %320 = vmatprep.subr.mxu0 0.0
    %321 = vmatpush1.msra.mxu0 0.0
    %322 = vmatprep.subr.mxu0 0.0
    %323 = vmatpush1.msra.mxu0 0.0
    %324 = vmatprep.subr.mxu0 0.0
    %325 = vmatpush1.msra.mxu0 0.0
    %326 = vmatprep.subr.mxu0 0.0
    %327 = vmatpush1.msra.mxu0 0.0
    %328 = vmatprep.subr.mxu0 0.0
    %329 = vmatpush1.msra.mxu0 0.0
    %330 = vmatprep.subr.mxu0 0.0
    %331 = vmatpush1.msra.mxu0 0.0
    %332 = vmatprep.subr.mxu0 0.0
    %333 = vmatpush1.msra.mxu0 0.0
    %334 = vmatprep.subr.mxu0 0.0
    %335 = vmatpush1.msra.mxu0 0.0
    %336 = vmatprep.subr.mxu0 0.0
    %337 = vmatpush1.msra.mxu0 0.0
    %338 = vmatprep.subr.mxu0 0.0
    %339 = vmatpush1.msra.mxu0 0.0
    %340 = vmatprep.subr.mxu0 0.0
    %341 = vmatpush1.msra.mxu0 0.0
    %342 = vmatprep.subr.mxu0 0.0
    %343 = vmatpush1.msra.mxu0 0.0
    %344 = vmatprep.subr.mxu0 0.0
    %345 = vmatpush1.msra.mxu0 0.0
    %346 = vmatprep.subr.mxu0 0.0
    %347 = vmatpush1.msra.mxu0 0.0
    %348 = vmatprep.subr.mxu0 0.0
    %349 = vmatpush1.msra.mxu0 0.0
    %350 = vmatprep.subr.mxu0 0.0
    %351 = vmatpush1.msra.mxu0 0.0
    %352 = vmatprep.subr.mxu0 0.0
    %353 = vmatpush1.msra.mxu0 0.0
    %354 = vmatprep.subr.mxu0 0.0
    %355 = vmatpush1.msra.mxu0 0.0
    %356 = vmatprep.subr.mxu0 0.0
    %357 = vmatpush1.msra.mxu0 0.0
    %358 = vmatprep.subr.mxu0 0.0
    %359 = vmatpush1.msra.mxu0 0.0
    %360 = vmatprep.subr.mxu0 0.0
    %361 = vmatpush1.msra.mxu0 0.0
    %362 = vmatprep.subr.mxu0 0.0
    %363 = vmatpush1.msra.mxu0 0.0
    %364 = vmatprep.subr.mxu0 0.0
    %365 = vmatpush1.msra.mxu0 0.0
    %366 = vmatprep.subr.mxu0 0.0
    %367 = vmatpush1.msra.mxu0 0.0
    %368 = vmatprep.subr.mxu0 0.0
    %369 = vmatpush1.msra.mxu0 0.0
    %370 = vmatprep.subr.mxu0 0.0
    %371 = vmatpush1.msra.mxu0 0.0
    %372 = vmatprep.mubr.f32.mxu0 0.0
    %373 = vmatmul.mubr.f32.gmra.mrb[0].mxu0 %v148
    %v374 = vpop.f32.mrb[0].mxu0
    %v375 = vadd.f32 %v140, %v374
    %v376 = vpop.f32.mrb[0].mxu0
    %377 = vdwg.mxu0
    %v378 = vld [vmem:[%s7] sm:$0xff]
    %v379 = vld [vmem:[%s7 + $0x8] sm:$0xff]
    %v380 = vld [vmem:[%s7 + $0x10] sm:$0xff]
    %v381 = vld [vmem:[%s7 + $0x18] sm:$0xff]
    %v382 = vld [vmem:[%s7 + $0x20] sm:$0xff]
    %v383 = vld [vmem:[%s7 + $0x28] sm:$0xff]
    %v384 = vld [vmem:[%s7 + $0x30] sm:$0xff]
    %v385 = vld [vmem:[%s7 + $0x38] sm:$0xff]
    %v386 = vld [vmem:[%s7 + $0x40] sm:$0xff]
    %v387 = vld [vmem:[%s7 + $0x48] sm:$0xff]
    %v388 = vld [vmem:[%s7 + $0x50] sm:$0x1]
    %v389 = vld [vmem:[%s7 + $0x58] sm:$0x1]
    %v390 = vld [vmem:[%s7 + $0x60] sm:$0x1]
    %v391 = vld [vmem:[%s7 + $0x68] sm:$0x1]
    %v392 = vld [vmem:[%s7 + $0x70] sm:$0x1]
    %v393 = vld [vmem:[%s8] sm:$0x1f]
    %v395 = vlaneseq
    %v396 = vshrl.u32 %v395, 7
    %v397 = vsub.s32 0, %v396
    %v398 = vrot.slane %v393, %v397
    %v399 = vlaneseq
    %v400 = vshrl.u32 %v399, 7
    %v401 = vsub.s32 1, %v400
    %v402 = vrot.slane %v393, %v401
    %v403 = vlaneseq
    %v404 = vshrl.u32 %v403, 7
    %v405 = vsub.s32 2, %v404
    %v406 = vrot.slane %v393, %v405
    %v407 = vlaneseq
    %v408 = vshrl.u32 %v407, 7
    %v409 = vsub.s32 3, %v408
    %v410 = vrot.slane %v393, %v409
    %v411 = vlaneseq
    %v412 = vshrl.u32 %v411, 7
    %v413 = vsub.s32 4, %v412
    %v414 = vrot.slane %v393, %v413
    %v421 = vsel %vm150, %v388, 0
    %v424 = vsel %vm150, %v389, 0
    %v427 = vsel %vm150, %v390, 0
    %v430 = vsel %vm150, %v391, 0
    %v433 = vsel %vm150, %v392, 0
    %435 = vmatprep.subr.mxu0 %v379
    %436 = vmatpush1.msra.mxu0 %v378
    %437 = vmatprep.subr.mxu0 %v384
    %438 = vmatpush1.msra.mxu0 %v383
    %439 = vmatprep.subr.mxu0 %v424
    %440 = vmatpush1.msra.mxu0 %v421
    %441 = vmatprep.subr.mxu0 0.0
    %442 = vmatpush1.msra.mxu0 0.0
    %443 = vmatprep.subr.mxu0 0.0
    %444 = vmatpush1.msra.mxu0 0.0
    %445 = vmatprep.subr.mxu0 0.0
    %446 = vmatpush1.msra.mxu0 0.0
    %447 = vmatprep.subr.mxu0 0.0
    %448 = vmatpush1.msra.mxu0 0.0
    %449 = vmatprep.subr.mxu0 0.0
    %450 = vmatpush1.msra.mxu0 0.0
    %451 = vmatprep.subr.mxu0 0.0
    %452 = vmatpush1.msra.mxu0 0.0
    %453 = vmatprep.subr.mxu0 0.0
    %454 = vmatpush1.msra.mxu0 0.0
    %455 = vmatprep.subr.mxu0 0.0
    %456 = vmatpush1.msra.mxu0 0.0
    %457 = vmatprep.subr.mxu0 0.0
    %458 = vmatpush1.msra.mxu0 0.0
    %459 = vmatprep.subr.mxu0 0.0
    %460 = vmatpush1.msra.mxu0 0.0
    %461 = vmatprep.subr.mxu0 0.0
    %462 = vmatpush1.msra.mxu0 0.0
    %463 = vmatprep.subr.mxu0 0.0
    %464 = vmatpush1.msra.mxu0 0.0
    %465 = vmatprep.subr.mxu0 0.0
    %466 = vmatpush1.msra.mxu0 0.0
    %467 = vmatprep.subr.mxu0 0.0
    %468 = vmatpush1.msra.mxu0 0.0
    %469 = vmatprep.subr.mxu0 0.0
    %470 = vmatpush1.msra.mxu0 0.0
    %471 = vmatprep.subr.mxu0 0.0
    %472 = vmatpush1.msra.mxu0 0.0
    %473 = vmatprep.subr.mxu0 0.0
    %474 = vmatpush1.msra.mxu0 0.0
    %475 = vmatprep.subr.mxu0 0.0
    %476 = vmatpush1.msra.mxu0 0.0
    %477 = vmatprep.subr.mxu0 0.0
    %478 = vmatpush1.msra.mxu0 0.0
    %479 = vmatprep.subr.mxu0 0.0
    %480 = vmatpush1.msra.mxu0 0.0
    %481 = vmatprep.subr.mxu0 0.0
    %482 = vmatpush1.msra.mxu0 0.0
    %483 = vmatprep.subr.mxu0 0.0
    %484 = vmatpush1.msra.mxu0 0.0
    %485 = vmatprep.subr.mxu0 0.0
    %486 = vmatpush1.msra.mxu0 0.0
    %487 = vmatprep.subr.mxu0 0.0
    %488 = vmatpush1.msra.mxu0 0.0
    %489 = vmatprep.subr.mxu0 0.0
    %490 = vmatpush1.msra.mxu0 0.0
    %491 = vmatprep.subr.mxu0 0.0
    %492 = vmatpush1.msra.mxu0 0.0
    %493 = vmatprep.subr.mxu0 0.0
    %494 = vmatpush1.msra.mxu0 0.0
    %495 = vmatprep.subr.mxu0 0.0
    %496 = vmatpush1.msra.mxu0 0.0
    %497 = vmatprep.subr.mxu0 0.0
    %498 = vmatpush1.msra.mxu0 0.0
    %499 = vmatprep.mubr.f32.mxu0 0.0
    %500 = vmatmul.mubr.f32.gmra.mrb[0].mxu0 %v148
    %v501 = vpop.f32.mrb[0].mxu0
    %v502 = vadd.f32 %v398, %v501
    %v503 = vpop.f32.mrb[0].mxu0
    %v504 = vadd.f32 %v402, %v503
    %505 = vdwg.mxu0
    %506 = vmatprep.subr.mxu0 %v381
    %507 = vmatpush1.msra.mxu0 %v380
    %508 = vmatprep.subr.mxu0 %v386
    %509 = vmatpush1.msra.mxu0 %v385
    %510 = vmatprep.subr.mxu0 %v430
    %511 = vmatpush1.msra.mxu0 %v427
    %512 = vmatprep.subr.mxu0 0.0
    %513 = vmatpush1.msra.mxu0 0.0
    %514 = vmatprep.subr.mxu0 0.0
    %515 = vmatpush1.msra.mxu0 0.0
    %516 = vmatprep.subr.mxu0 0.0
    %517 = vmatpush1.msra.mxu0 0.0
    %518 = vmatprep.subr.mxu0 0.0
    %519 = vmatpush1.msra.mxu0 0.0
    %520 = vmatprep.subr.mxu0 0.0
    %521 = vmatpush1.msra.mxu0 0.0
    %522 = vmatprep.subr.mxu0 0.0
    %523 = vmatpush1.msra.mxu0 0.0
    %524 = vmatprep.subr.mxu0 0.0
    %525 = vmatpush1.msra.mxu0 0.0
    %526 = vmatprep.subr.mxu0 0.0
    %527 = vmatpush1.msra.mxu0 0.0
    %528 = vmatprep.subr.mxu0 0.0
    %529 = vmatpush1.msra.mxu0 0.0
    %530 = vmatprep.subr.mxu0 0.0
    %531 = vmatpush1.msra.mxu0 0.0
    %532 = vmatprep.subr.mxu0 0.0
    %533 = vmatpush1.msra.mxu0 0.0
    %534 = vmatprep.subr.mxu0 0.0
    %535 = vmatpush1.msra.mxu0 0.0
    %536 = vmatprep.subr.mxu0 0.0
    %537 = vmatpush1.msra.mxu0 0.0
    %538 = vmatprep.subr.mxu0 0.0
    %539 = vmatpush1.msra.mxu0 0.0
    %540 = vmatprep.subr.mxu0 0.0
    %541 = vmatpush1.msra.mxu0 0.0
    %542 = vmatprep.subr.mxu0 0.0
    %543 = vmatpush1.msra.mxu0 0.0
    %544 = vmatprep.subr.mxu0 0.0
    %545 = vmatpush1.msra.mxu0 0.0
    %546 = vmatprep.subr.mxu0 0.0
    %547 = vmatpush1.msra.mxu0 0.0
    %548 = vmatprep.subr.mxu0 0.0
    %549 = vmatpush1.msra.mxu0 0.0
    %550 = vmatprep.subr.mxu0 0.0
    %551 = vmatpush1.msra.mxu0 0.0
    %552 = vmatprep.subr.mxu0 0.0
    %553 = vmatpush1.msra.mxu0 0.0
    %554 = vmatprep.subr.mxu0 0.0
    %555 = vmatpush1.msra.mxu0 0.0
    %556 = vmatprep.subr.mxu0 0.0
    %557 = vmatpush1.msra.mxu0 0.0
    %558 = vmatprep.subr.mxu0 0.0
    %559 = vmatpush1.msra.mxu0 0.0
    %560 = vmatprep.subr.mxu0 0.0
    %561 = vmatpush1.msra.mxu0 0.0
    %562 = vmatprep.subr.mxu0 0.0
    %563 = vmatpush1.msra.mxu0 0.0
    %564 = vmatprep.subr.mxu0 0.0
    %565 = vmatpush1.msra.mxu0 0.0
    %566 = vmatprep.subr.mxu0 0.0
    %567 = vmatpush1.msra.mxu0 0.0
    %568 = vmatprep.subr.mxu0 0.0
    %569 = vmatpush1.msra.mxu0 0.0
    %570 = vmatprep.mubr.f32.mxu0 0.0
    %571 = vmatmul.mubr.f32.gmra.mrb[0].mxu0 %v148
    %v572 = vpop.f32.mrb[0].mxu0
    %v573 = vadd.f32 %v406, %v572
    %v574 = vpop.f32.mrb[0].mxu0
    %v575 = vadd.f32 %v410, %v574
    %576 = vdwg.mxu0
    %577 = vmatprep.subr.mxu0 0.0
    %578 = vmatpush1.msra.mxu0 %v382
    %579 = vmatprep.subr.mxu0 0.0
    %580 = vmatpush1.msra.mxu0 %v387
    %581 = vmatprep.subr.mxu0 0.0
    %582 = vmatpush1.msra.mxu0 %v433
    %583 = vmatprep.subr.mxu0 0.0
    %584 = vmatpush1.msra.mxu0 0.0
    %585 = vmatprep.subr.mxu0 0.0
    %586 = vmatpush1.msra.mxu0 0.0
    %587 = vmatprep.subr.mxu0 0.0
    %588 = vmatpush1.msra.mxu0 0.0
    %589 = vmatprep.subr.mxu0 0.0
    %590 = vmatpush1.msra.mxu0 0.0
    %591 = vmatprep.subr.mxu0 0.0
    %592 = vmatpush1.msra.mxu0 0.0
    %593 = vmatprep.subr.mxu0 0.0
    %594 = vmatpush1.msra.mxu0 0.0
    %595 = vmatprep.subr.mxu0 0.0
    %596 = vmatpush1.msra.mxu0 0.0
    %597 = vmatprep.subr.mxu0 0.0
    %598 = vmatpush1.msra.mxu0 0.0
    %599 = vmatprep.subr.mxu0 0.0
    %600 = vmatpush1.msra.mxu0 0.0
    %601 = vmatprep.subr.mxu0 0.0
    %602 = vmatpush1.msra.mxu0 0.0
    %603 = vmatprep.subr.mxu0 0.0
    %604 = vmatpush1.msra.mxu0 0.0
    %605 = vmatprep.subr.mxu0 0.0
    %606 = vmatpush1.msra.mxu0 0.0
    %607 = vmatprep.subr.mxu0 0.0
    %608 = vmatpush1.msra.mxu0 0.0
    %609 = vmatprep.subr.mxu0 0.0
    %610 = vmatpush1.msra.mxu0 0.0
    %611 = vmatprep.subr.mxu0 0.0
    %612 = vmatpush1.msra.mxu0 0.0
    %613 = vmatprep.subr.mxu0 0.0
    %614 = vmatpush1.msra.mxu0 0.0
    %615 = vmatprep.subr.mxu0 0.0
    %616 = vmatpush1.msra.mxu0 0.0
    %617 = vmatprep.subr.mxu0 0.0
    %618 = vmatpush1.msra.mxu0 0.0
    %619 = vmatprep.subr.mxu0 0.0
    %620 = vmatpush1.msra.mxu0 0.0
    %621 = vmatprep.subr.mxu0 0.0
    %622 = vmatpush1.msra.mxu0 0.0
    %623 = vmatprep.subr.mxu0 0.0
    %624 = vmatpush1.msra.mxu0 0.0
    %625 = vmatprep.subr.mxu0 0.0
    %626 = vmatpush1.msra.mxu0 0.0
    %627 = vmatprep.subr.mxu0 0.0
    %628 = vmatpush1.msra.mxu0 0.0
    %629 = vmatprep.subr.mxu0 0.0
    %630 = vmatpush1.msra.mxu0 0.0
    %631 = vmatprep.subr.mxu0 0.0
    %632 = vmatpush1.msra.mxu0 0.0
    %633 = vmatprep.subr.mxu0 0.0
    %634 = vmatpush1.msra.mxu0 0.0
    %635 = vmatprep.subr.mxu0 0.0
    %636 = vmatpush1.msra.mxu0 0.0
    %637 = vmatprep.subr.mxu0 0.0
    %638 = vmatpush1.msra.mxu0 0.0
    %639 = vmatprep.subr.mxu0 0.0
    %640 = vmatpush1.msra.mxu0 0.0
    %641 = vmatprep.mubr.f32.mxu0 0.0
    %642 = vmatmul.mubr.f32.gmra.mrb[0].mxu0 %v148
    %v643 = vpop.f32.mrb[0].mxu0
    %v644 = vadd.f32 %v414, %v643
    %v645 = vpop.f32.mrb[0].mxu0
    %646 = vdwg.mxu0
    %v647 = vmul.f32 %v233, %v502
    %v648 = vmul.f32 %v235, %v504
    %v649 = vmul.f32 %v304, %v573
    %v650 = vmul.f32 %v306, %v575
    %v651 = vmul.f32 %v375, %v644
    %v652 = vld [vmem:[%s9] sm:$0xff]
    %v653 = vld [vmem:[%s9 + $0x8] sm:$0xff]
    %v654 = vld [vmem:[%s9 + $0x10] sm:$0xff]
    %v655 = vld [vmem:[%s9 + $0x18] sm:$0xff]
    %v656 = vld [vmem:[%s9 + $0x20] sm:$0xff]
    %v657 = vld [vmem:[%s9 + $0x28] sm:$0xff]
    %v658 = vld [vmem:[%s9 + $0x30] sm:$0xff]
    %v659 = vld [vmem:[%s9 + $0x38] sm:$0xff]
    %v660 = vld [vmem:[%s9 + $0x40] sm:$0xff]
    %v661 = vld [vmem:[%s9 + $0x48] sm:$0xff]
    %v662 = vld [vmem:[%s9 + $0x50] sm:$0xff]
    %v663 = vld [vmem:[%s9 + $0x58] sm:$0xff]
    %v664 = vld [vmem:[%s9 + $0x60] sm:$0xff]
    %v665 = vld [vmem:[%s9 + $0x68] sm:$0xff]
    %v666 = vld [vmem:[%s9 + $0x70] sm:$0xff]
    %v667 = vld [vmem:[%s9 + $0x78] sm:$0xff]
    %v668 = vld [vmem:[%s9 + $0x80] sm:$0xff]
    %v669 = vld [vmem:[%s9 + $0x88] sm:$0xff]
    %v670 = vld [vmem:[%s9 + $0x90] sm:$0xff]
    %v671 = vld [vmem:[%s9 + $0x98] sm:$0xff]
    %v672 = vld [vmem:[%s9 + $0xa0] sm:$0xff]
    %v673 = vld [vmem:[%s9 + $0xa8] sm:$0xff]
    %v674 = vld [vmem:[%s9 + $0xb0] sm:$0xff]
    %v675 = vld [vmem:[%s9 + $0xb8] sm:$0xff]
    %v676 = vld [vmem:[%s9 + $0xc0] sm:$0xff]
    %v677 = vld [vmem:[%s9 + $0xc8] sm:$0xff]
    %v678 = vld [vmem:[%s9 + $0xd0] sm:$0xff]
    %v679 = vld [vmem:[%s9 + $0xd8] sm:$0xff]
    %v680 = vld [vmem:[%s9 + $0xe0] sm:$0xff]
    %v681 = vld [vmem:[%s9 + $0xe8] sm:$0xff]
    %v682 = vld [vmem:[%s9 + $0xf0] sm:$0xff]
    %v683 = vld [vmem:[%s9 + $0xf8] sm:$0xff]
    %v684 = vld [vmem:[%s9 + $0x100] sm:$0xff]
    %v685 = vld [vmem:[%s9 + $0x108] sm:$0xff]
    %v686 = vld [vmem:[%s9 + $0x110] sm:$0xff]
    %v687 = vld [vmem:[%s9 + $0x118] sm:$0xff]
    %v688 = vld [vmem:[%s9 + $0x120] sm:$0xff]
    %v689 = vld [vmem:[%s9 + $0x128] sm:$0xff]
    %v690 = vld [vmem:[%s9 + $0x130] sm:$0xff]
    %v691 = vld [vmem:[%s9 + $0x138] sm:$0xff]
    %v692 = vld [vmem:[%s9 + $0x140] sm:$0xff]
    %v693 = vld [vmem:[%s9 + $0x148] sm:$0xff]
    %v694 = vld [vmem:[%s9 + $0x150] sm:$0xff]
    %v695 = vld [vmem:[%s9 + $0x158] sm:$0xff]
    %v696 = vld [vmem:[%s9 + $0x160] sm:$0xff]
    %v697 = vld [vmem:[%s9 + $0x168] sm:$0xff]
    %v698 = vld [vmem:[%s9 + $0x170] sm:$0xff]
    %v699 = vld [vmem:[%s9 + $0x178] sm:$0xff]
    %v700 = vld [vmem:[%s9 + $0x180] sm:$0xff]
    %v701 = vld [vmem:[%s9 + $0x188] sm:$0xff]
    %v702 = vld [vmem:[%s9 + $0x190] sm:$0xff]
    %v703 = vld [vmem:[%s9 + $0x198] sm:$0xff]
    %v704 = vld [vmem:[%s9 + $0x1a0] sm:$0xff]
    %v705 = vld [vmem:[%s9 + $0x1a8] sm:$0xff]
    %v706 = vld [vmem:[%s9 + $0x1b0] sm:$0xff]
    %v707 = vld [vmem:[%s9 + $0x1b8] sm:$0xff]
    %v708 = vld [vmem:[%s9 + $0x1c0] sm:$0xff]
    %v709 = vld [vmem:[%s9 + $0x1c8] sm:$0xff]
    %v710 = vld [vmem:[%s9 + $0x1d0] sm:$0xff]
    %v711 = vld [vmem:[%s9 + $0x1d8] sm:$0xff]
    %v712 = vld [vmem:[%s9 + $0x1e0] sm:$0xff]
    %v713 = vld [vmem:[%s9 + $0x1e8] sm:$0xff]
    %v714 = vld [vmem:[%s9 + $0x1f0] sm:$0xff]
    %v715 = vld [vmem:[%s9 + $0x1f8] sm:$0xff]
    %v716 = vld [vmem:[%s9 + $0x200] sm:$0xff]
    %v717 = vld [vmem:[%s9 + $0x208] sm:$0xff]
    %v718 = vld [vmem:[%s9 + $0x210] sm:$0xff]
    %v719 = vld [vmem:[%s9 + $0x218] sm:$0xff]
    %vm720 = vcmask 261120
    %v722 = vsel %vm720, %v651, 0
    %724 = vmatprep.subr.mxu0 0.0
    %725 = vmatpush1.msra.mxu0 %v652
    %726 = vmatprep.subr.mxu0 0.0
    %727 = vmatpush1.msra.mxu0 %v653
    %728 = vmatprep.subr.mxu0 0.0
    %729 = vmatpush1.msra.mxu0 %v654
    %730 = vmatprep.subr.mxu0 0.0
    %731 = vmatpush1.msra.mxu0 %v655
    %732 = vmatprep.subr.mxu0 0.0
    %733 = vmatpush1.msra.mxu0 %v656
    %734 = vmatprep.subr.mxu0 0.0
    %735 = vmatpush1.msra.mxu0 %v657
    %736 = vmatprep.subr.mxu0 0.0
    %737 = vmatpush1.msra.mxu0 %v658
    %738 = vmatprep.subr.mxu0 0.0
    %739 = vmatpush1.msra.mxu0 %v659
    %740 = vmatprep.subr.mxu0 0.0
    %741 = vmatpush1.msra.mxu0 %v660
    %742 = vmatprep.subr.mxu0 0.0
    %743 = vmatpush1.msra.mxu0 %v661
    %744 = vmatprep.subr.mxu0 0.0
    %745 = vmatpush1.msra.mxu0 %v662
    %746 = vmatprep.subr.mxu0 0.0
    %747 = vmatpush1.msra.mxu0 %v663
    %748 = vmatprep.subr.mxu0 0.0
    %749 = vmatpush1.msra.mxu0 %v664
    %750 = vmatprep.subr.mxu0 0.0
    %751 = vmatpush1.msra.mxu0 %v665
    %752 = vmatprep.subr.mxu0 0.0
    %753 = vmatpush1.msra.mxu0 %v666
    %754 = vmatprep.subr.mxu0 0.0
    %755 = vmatpush1.msra.mxu0 %v667
    %756 = vmatprep.subr.mxu0 0.0
    %757 = vmatpush1.msra.mxu0 %v668
    %758 = vmatprep.subr.mxu0 0.0
    %759 = vmatpush1.msra.mxu0 %v669
    %760 = vmatprep.subr.mxu0 0.0
    %761 = vmatpush1.msra.mxu0 %v670
    %762 = vmatprep.subr.mxu0 0.0
    %763 = vmatpush1.msra.mxu0 %v671
    %764 = vmatprep.subr.mxu0 0.0
    %765 = vmatpush1.msra.mxu0 %v672
    %766 = vmatprep.subr.mxu0 0.0
    %767 = vmatpush1.msra.mxu0 %v673
    %768 = vmatprep.subr.mxu0 0.0
    %769 = vmatpush1.msra.mxu0 %v674
    %770 = vmatprep.subr.mxu0 0.0
    %771 = vmatpush1.msra.mxu0 %v675
    %772 = vmatprep.subr.mxu0 0.0
    %773 = vmatpush1.msra.mxu0 %v676
    %774 = vmatprep.subr.mxu0 0.0
    %775 = vmatpush1.msra.mxu0 %v677
    %776 = vmatprep.subr.mxu0 0.0
    %777 = vmatpush1.msra.mxu0 %v678
    %778 = vmatprep.subr.mxu0 0.0
    %779 = vmatpush1.msra.mxu0 %v679
    %780 = vmatprep.subr.mxu0 0.0
    %781 = vmatpush1.msra.mxu0 %v680
    %782 = vmatprep.subr.mxu0 0.0
    %783 = vmatpush1.msra.mxu0 %v681
    %784 = vmatprep.subr.mxu0 0.0
    %785 = vmatpush1.msra.mxu0 %v682
    %786 = vmatprep.subr.mxu0 0.0
    %787 = vmatpush1.msra.mxu0 %v683
    %788 = vmatprep.mubr.f32.mxu0 %v648
    %789 = vmatmul.mubr.f32.gmra.mrb[0].mxu0 %v647
    %v790 = vpop.f32.mrb[0].mxu0
    %v791 = vadd.f32 0.0, %v790
    %v792 = vpop.f32.mrb[0].mxu0
    %793 = vdwg.mxu0
    %794 = vmatprep.subr.mxu0 0.0
    %795 = vmatpush1.msra.mxu0 %v684
    %796 = vmatprep.subr.mxu0 0.0
    %797 = vmatpush1.msra.mxu0 %v685
    %798 = vmatprep.subr.mxu0 0.0
    %799 = vmatpush1.msra.mxu0 %v686
    %800 = vmatprep.subr.mxu0 0.0
    %801 = vmatpush1.msra.mxu0 %v687
    %802 = vmatprep.subr.mxu0 0.0
    %803 = vmatpush1.msra.mxu0 %v688
    %804 = vmatprep.subr.mxu0 0.0
    %805 = vmatpush1.msra.mxu0 %v689
    %806 = vmatprep.subr.mxu0 0.0
    %807 = vmatpush1.msra.mxu0 %v690
    %808 = vmatprep.subr.mxu0 0.0
    %809 = vmatpush1.msra.mxu0 %v691
    %810 = vmatprep.subr.mxu0 0.0
    %811 = vmatpush1.msra.mxu0 %v692
    %812 = vmatprep.subr.mxu0 0.0
    %813 = vmatpush1.msra.mxu0 %v693
    %814 = vmatprep.subr.mxu0 0.0
    %815 = vmatpush1.msra.mxu0 %v694
    %816 = vmatprep.subr.mxu0 0.0
    %817 = vmatpush1.msra.mxu0 %v695
    %818 = vmatprep.subr.mxu0 0.0
    %819 = vmatpush1.msra.mxu0 %v696
    %820 = vmatprep.subr.mxu0 0.0
    %821 = vmatpush1.msra.mxu0 %v697
    %822 = vmatprep.subr.mxu0 0.0
    %823 = vmatpush1.msra.mxu0 %v698
    %824 = vmatprep.subr.mxu0 0.0
    %825 = vmatpush1.msra.mxu0 %v699
    %826 = vmatprep.subr.mxu0 0.0
    %827 = vmatpush1.msra.mxu0 %v700
    %828 = vmatprep.subr.mxu0 0.0
    %829 = vmatpush1.msra.mxu0 %v701
    %830 = vmatprep.subr.mxu0 0.0
    %831 = vmatpush1.msra.mxu0 %v702
    %832 = vmatprep.subr.mxu0 0.0
    %833 = vmatpush1.msra.mxu0 %v703
    %834 = vmatprep.subr.mxu0 0.0
    %835 = vmatpush1.msra.mxu0 %v704
    %836 = vmatprep.subr.mxu0 0.0
    %837 = vmatpush1.msra.mxu0 %v705
    %838 = vmatprep.subr.mxu0 0.0
    %839 = vmatpush1.msra.mxu0 %v706
    %840 = vmatprep.subr.mxu0 0.0
    %841 = vmatpush1.msra.mxu0 %v707
    %842 = vmatprep.subr.mxu0 0.0
    %843 = vmatpush1.msra.mxu0 %v708
    %844 = vmatprep.subr.mxu0 0.0
    %845 = vmatpush1.msra.mxu0 %v709
    %846 = vmatprep.subr.mxu0 0.0
    %847 = vmatpush1.msra.mxu0 %v710
    %848 = vmatprep.subr.mxu0 0.0
    %849 = vmatpush1.msra.mxu0 %v711
    %850 = vmatprep.subr.mxu0 0.0
    %851 = vmatpush1.msra.mxu0 %v712
    %852 = vmatprep.subr.mxu0 0.0
    %853 = vmatpush1.msra.mxu0 %v713
    %854 = vmatprep.subr.mxu0 0.0
    %855 = vmatpush1.msra.mxu0 %v714
    %856 = vmatprep.subr.mxu0 0.0
    %857 = vmatpush1.msra.mxu0 %v715
    %858 = vmatprep.mubr.f32.mxu0 %v650
    %859 = vmatmul.mubr.f32.gmra.mrb[0].mxu0 %v649
    %v860 = vpop.f32.mrb[0].mxu0
    %v861 = vadd.f32 %v791, %v860
    %v862 = vpop.f32.mrb[0].mxu0
    %863 = vdwg.mxu0
    %864 = vmatprep.subr.mxu0 0.0
    %865 = vmatpush1.msra.mxu0 %v716
    %866 = vmatprep.subr.mxu0 0.0
    %867 = vmatpush1.msra.mxu0 %v717
    %868 = vmatprep.subr.mxu0 0.0
    %869 = vmatpush1.msra.mxu0 %v718
    %870 = vmatprep.subr.mxu0 0.0
    %871 = vmatpush1.msra.mxu0 %v719
    %872 = vmatprep.subr.mxu0 0.0
    %873 = vmatpush1.msra.mxu0 0.0
    %874 = vmatprep.subr.mxu0 0.0
    %875 = vmatpush1.msra.mxu0 0.0
    %876 = vmatprep.subr.mxu0 0.0
    %877 = vmatpush1.msra.mxu0 0.0
    %878 = vmatprep.subr.mxu0 0.0
    %879 = vmatpush1.msra.mxu0 0.0
    %880 = vmatprep.subr.mxu0 0.0
    %881 = vmatpush1.msra.mxu0 0.0
    %882 = vmatprep.subr.mxu0 0.0
    %883 = vmatpush1.msra.mxu0 0.0
    %884 = vmatprep.subr.mxu0 0.0
    %885 = vmatpush1.msra.mxu0 0.0
    %886 = vmatprep.subr.mxu0 0.0
    %887 = vmatpush1.msra.mxu0 0.0
    %888 = vmatprep.subr.mxu0 0.0
    %889 = vmatpush1.msra.mxu0 0.0
    %890 = vmatprep.subr.mxu0 0.0
    %891 = vmatpush1.msra.mxu0 0.0
    %892 = vmatprep.subr.mxu0 0.0
    %893 = vmatpush1.msra.mxu0 0.0
    %894 = vmatprep.subr.mxu0 0.0
    %895 = vmatpush1.msra.mxu0 0.0
    %896 = vmatprep.subr.mxu0 0.0
    %897 = vmatpush1.msra.mxu0 0.0
    %898 = vmatprep.subr.mxu0 0.0
    %899 = vmatpush1.msra.mxu0 0.0
    %900 = vmatprep.subr.mxu0 0.0
    %901 = vmatpush1.msra.mxu0 0.0
    %902 = vmatprep.subr.mxu0 0.0
    %903 = vmatpush1.msra.mxu0 0.0
    %904 = vmatprep.subr.mxu0 0.0
    %905 = vmatpush1.msra.mxu0 0.0
    %906 = vmatprep.subr.mxu0 0.0
    %907 = vmatpush1.msra.mxu0 0.0
    %908 = vmatprep.subr.mxu0 0.0
    %909 = vmatpush1.msra.mxu0 0.0
    %910 = vmatprep.subr.mxu0 0.0
    %911 = vmatpush1.msra.mxu0 0.0
    %912 = vmatprep.subr.mxu0 0.0
    %913 = vmatpush1.msra.mxu0 0.0
    %914 = vmatprep.subr.mxu0 0.0
    %915 = vmatpush1.msra.mxu0 0.0
    %916 = vmatprep.subr.mxu0 0.0
    %917 = vmatpush1.msra.mxu0 0.0
    %918 = vmatprep.subr.mxu0 0.0
    %919 = vmatpush1.msra.mxu0 0.0
    %920 = vmatprep.subr.mxu0 0.0
    %921 = vmatpush1.msra.mxu0 0.0
    %922 = vmatprep.subr.mxu0 0.0
    %923 = vmatpush1.msra.mxu0 0.0
    %924 = vmatprep.subr.mxu0 0.0
    %925 = vmatpush1.msra.mxu0 0.0
    %926 = vmatprep.subr.mxu0 0.0
    %927 = vmatpush1.msra.mxu0 0.0
    %928 = vmatprep.mubr.f32.mxu0 0.0
    %929 = vmatmul.mubr.f32.gmra.mrb[0].mxu0 %v722
    %v930 = vpop.f32.mrb[0].mxu0
    %v931 = vadd.f32 %v861, %v930
    %v932 = vpop.f32.mrb[0].mxu0
    %933 = vdwg.mxu0
    %v934 = vmul.f32 %v931, 0.17677669
    %v935 = vsub.f32 %v934, %v934
    %v936 = vmul.f32 %v935, 1.442695
    %v937 = vpow.pop %v936
    %v938 = vld [vmem:[%s10] sm:$0xff]
    %v939 = vld [vmem:[%s10 + $0x8] sm:$0xff]
    %v940 = vld [vmem:[%s10 + $0x10] sm:$0x1]
    %v941 = vld [vmem:[%s11] sm:$0x1]
    %v943 = vlaneseq
    %v944 = vshrl.u32 %v943, 7
    %v945 = vsub.s32 0, %v944
    %v946 = vrot.slane %v941, %v945
    %v949 = vsel %vm146, %v937, 0
    %v952 = vsel %vm150, %v940, 0
    %954 = vmatprep.subr.mxu0 0.0
    %955 = vmatpush1.msra.mxu0 %v938
    %956 = vmatprep.subr.mxu0 0.0
    %957 = vmatpush1.msra.mxu0 %v939
    %958 = vmatprep.subr.mxu0 0.0
    %959 = vmatpush1.msra.mxu0 %v952
    %960 = vmatprep.subr.mxu0 0.0
    %961 = vmatpush1.msra.mxu0 0.0
    %962 = vmatprep.subr.mxu0 0.0
    %963 = vmatpush1.msra.mxu0 0.0
    %964 = vmatprep.subr.mxu0 0.0
    %965 = vmatpush1.msra.mxu0 0.0
    %966 = vmatprep.subr.mxu0 0.0
    %967 = vmatpush1.msra.mxu0 0.0
    %968 = vmatprep.subr.mxu0 0.0
    %969 = vmatpush1.msra.mxu0 0.0
    %970 = vmatprep.subr.mxu0 0.0
    %971 = vmatpush1.msra.mxu0 0.0
    %972 = vmatprep.subr.mxu0 0.0
    %973 = vmatpush1.msra.mxu0 0.0
    %974 = vmatprep.subr.mxu0 0.0
    %975 = vmatpush1.msra.mxu0 0.0
    %976 = vmatprep.subr.mxu0 0.0
    %977 = vmatpush1.msra.mxu0 0.0
    %978 = vmatprep.subr.mxu0 0.0
    %979 = vmatpush1.msra.mxu0 0.0
    %980 = vmatprep.subr.mxu0 0.0
    %981 = vmatpush1.msra.mxu0 0.0
    %982 = vmatprep.subr.mxu0 0.0
    %983 = vmatpush1.msra.mxu0 0.0
    %984 = vmatprep.subr.mxu0 0.0
    %985 = vmatpush1.msra.mxu0 0.0
    %986 = vmatprep.subr.mxu0 0.0
    %987 = vmatpush1.msra.mxu0 0.0
    %988 = vmatprep.subr.mxu0 0.0
    %989 = vmatpush1.msra.mxu0 0.0
    %990 = vmatprep.subr.mxu0 0.0
    %991 = vmatpush1.msra.mxu0 0.0
    %992 = vmatprep.subr.mxu0 0.0
    %993 = vmatpush1.msra.mxu0 0.0
    %994 = vmatprep.subr.mxu0 0.0
    %995 = vmatpush1.msra.mxu0 0.0
    %996 = vmatprep.subr.mxu0 0.0
    %997 = vmatpush1.msra.mxu0 0.0
    %998 = vmatprep.subr.mxu0 0.0
    %999 = vmatpush1.msra.mxu0 0.0
    %1000 = vmatprep.subr.mxu0 0.0
    %1001 = vmatpush1.msra.mxu0 0.0
    %1002 = vmatprep.subr.mxu0 0.0
    %1003 = vmatpush1.msra.mxu0 0.0
    %1004 = vmatprep.subr.mxu0 0.0
    %1005 = vmatpush1.msra.mxu0 0.0
    %1006 = vmatprep.subr.mxu0 0.0
    %1007 = vmatpush1.msra.mxu0 0.0
    %1008 = vmatprep.subr.mxu0 0.0
    %1009 = vmatpush1.msra.mxu0 0.0
    %1010 = vmatprep.subr.mxu0 0.0
    %1011 = vmatpush1.msra.mxu0 0.0
    %1012 = vmatprep.subr.mxu0 0.0
    %1013 = vmatpush1.msra.mxu0 0.0
    %1014 = vmatprep.subr.mxu0 0.0
    %1015 = vmatpush1.msra.mxu0 0.0
    %1016 = vmatprep.subr.mxu0 0.0
    %1017 = vmatpush1.msra.mxu0 0.0
    %1018 = vmatprep.mubr.f32.mxu0 0.0
    %1019 = vmatmul.mubr.f32.gmra.mrb[0].mxu0 %v949
    %v1020 = vpop.f32.mrb[0].mxu0
    %v1021 = vadd.f32 %v946, %v1020
    %v1022 = vpop.f32.mrb[0].mxu0
    %1023 = vdwg.mxu0
    %v1024 = vmax.f32 %v1021, 0.0
    %v1025 = vld [vmem:[%s12] sm:$0xff]
    %v1026 = vld [vmem:[%s13] sm:$0x1]
    %v1028 = vlaneseq
    %v1029 = vshrl.u32 %v1028, 7
    %v1030 = vsub.s32 0, %v1029
    %v1031 = vrot.slane %v1026, %v1030
    %vm1033 = vcmask 64512
    %v1035 = vsel %vm1033, %v1024, 0
    %1037 = vmatprep.subr.mxu0 0.0
    %1038 = vmatpush1.msra.mxu0 %v1025
    %1039 = vmatprep.subr.mxu0 0.0
    %1040 = vmatpush1.msra.mxu0 0.0
    %1041 = vmatprep.subr.mxu0 0.0
    %1042 = vmatpush1.msra.mxu0 0.0
    %1043 = vmatprep.subr.mxu0 0.0
    %1044 = vmatpush1.msra.mxu0 0.0
    %1045 = vmatprep.subr.mxu0 0.0
    %1046 = vmatpush1.msra.mxu0 0.0
    %1047 = vmatprep.subr.mxu0 0.0
    %1048 = vmatpush1.msra.mxu0 0.0
    %1049 = vmatprep.subr.mxu0 0.0
    %1050 = vmatpush1.msra.mxu0 0.0
    %1051 = vmatprep.subr.mxu0 0.0
    %1052 = vmatpush1.msra.mxu0 0.0
    %1053 = vmatprep.subr.mxu0 0.0
    %1054 = vmatpush1.msra.mxu0 0.0
    %1055 = vmatprep.subr.mxu0 0.0
    %1056 = vmatpush1.msra.mxu0 0.0
    %1057 = vmatprep.subr.mxu0 0.0
    %1058 = vmatpush1.msra.mxu0 0.0
    %1059 = vmatprep.subr.mxu0 0.0
    %1060 = vmatpush1.msra.mxu0 0.0
    %1061 = vmatprep.subr.mxu0 0.0
    %1062 = vmatpush1.msra.mxu0 0.0
    %1063 = vmatprep.subr.mxu0 0.0
    %1064 = vmatpush1.msra.mxu0 0.0
    %1065 = vmatprep.subr.mxu0 0.0
    %1066 = vmatpush1.msra.mxu0 0.0
    %1067 = vmatprep.subr.mxu0 0.0
    %1068 = vmatpush1.msra.mxu0 0.0
    %1069 = vmatprep.subr.mxu0 0.0
    %1070 = vmatpush1.msra.mxu0 0.0
    %1071 = vmatprep.subr.mxu0 0.0
    %1072 = vmatpush1.msra.mxu0 0.0
    %1073 = vmatprep.subr.mxu0 0.0
    %1074 = vmatpush1.msra.mxu0 0.0
    %1075 = vmatprep.subr.mxu0 0.0
    %1076 = vmatpush1.msra.mxu0 0.0
    %1077 = vmatprep.subr.mxu0 0.0
    %1078 = vmatpush1.msra.mxu0 0.0
    %1079 = vmatprep.subr.mxu0 0.0
    %1080 = vmatpush1.msra.mxu0 0.0
    %1081 = vmatprep.subr.mxu0 0.0
    %1082 = vmatpush1.msra.mxu0 0.0
    %1083 = vmatprep.subr.mxu0 0.0
    %1084 = vmatpush1.msra.mxu0 0.0
    %1085 = vmatprep.subr.mxu0 0.0
    %1086 = vmatpush1.msra.mxu0 0.0
    %1087 = vmatprep.subr.mxu0 0.0
    %1088 = vmatpush1.msra.mxu0 0.0
    %1089 = vmatprep.subr.mxu0 0.0
    %1090 = vmatpush1.msra.mxu0 0.0
    %1091 = vmatprep.subr.mxu0 0.0
    %1092 = vmatpush1.msra.mxu0 0.0
    %1093 = vmatprep.subr.mxu0 0.0
    %1094 = vmatpush1.msra.mxu0 0.0
    %1095 = vmatprep.subr.mxu0 0.0
    %1096 = vmatpush1.msra.mxu0 0.0
    %1097 = vmatprep.subr.mxu0 0.0
    %1098 = vmatpush1.msra.mxu0 0.0
    %1099 = vmatprep.subr.mxu0 0.0
    %1100 = vmatpush1.msra.mxu0 0.0
    %1101 = vmatprep.mubr.f32.mxu0 0.0
    %1102 = vmatmul.mubr.f32.gmra.mrb[0].mxu0 %v1035
    %v1103 = vpop.f32.mrb[0].mxu0
    %v1104 = vadd.f32 %v1031, %v1103
    %v1105 = vpop.f32.mrb[0].mxu0
    %1106 = vdwg.mxu0
    %v1107 = vsel %vm73, %v1104, -inf
    %1108 = vmax.xlane.f32.xlu0 %v1107
    %v1109 = vpop.xlane.xlu0 %1108
    %v1110 = vsub.f32 %v1104, %v1109
    %v1111 = vmul.f32 %v1110, 1.442695
    %v1112 = vpow.pop %v1111
    %v1113 = vsel %vm73, %v1112, 0.0
    %1114 = vadd.xlane.f32.xlu0 %v1113
    %v1115 = vpop.xlane.xlu0 %1114
    %v1116 = vrcp.pop %v1115
    %v1117 = vmul.f32 %v1112, %v1116
    %1118 = vst.msk [vmem:[%s14] sm:$0x3] %vm73, %v1117
    // Predicated region
    $region62: #{joint_att_forward.4} parent=1 // pred_check
      _
    $region63: #{joint_att_forward.4} parent=1 // pred_check_branch
      %1120 = sbr.rel (0) target = $region65
    $region64: #{joint_att_forward.4} parent=1 // pred_region
      _
    $region65: #{joint_att_forward.4} parent=1 // pred_fallthru
      _
    // Predicated region
    $region66: #{joint_att_forward.4} parent=1 // pred_check
      _
    $region67: #{joint_att_forward.4} parent=1 // pred_check_branch
      %1122 = sbr.rel (0) target = $region69
    $region68: #{joint_att_forward.4} parent=1 // pred_region
      _
    $region69: #{joint_att_forward.4} parent=1 // pred_fallthru
      _
    %1123 = vsyncpa [#allocation3], 1

</llo_original>
